<compile_context>
chip_gen: v7x
topology: tpu7x:2x2x1
jax: 0.10.0
libtpu: 0.0.40
codegen_flags: <defaults>
</compile_context>

<pallas_src>
import jax
import jax.numpy as jnp
from jax import lax
from jax.experimental import pallas as pl
from jax.experimental.pallas import tpu as pltpu

IN_FEATURE = 512
LATENT_DIM = 128              # hidden width = latent_dim * 2 = 256
HIDDEN = LATENT_DIM * 2
OUT_FEATURE = 128
BN_EPS = 1e-5
LRELU_SLOPE = 0.01            # nn.LeakyReLU() default negative slope

# Row offsets of each weight matrix inside the packed [1280, 256] slab.
_W1_LO, _W1_HI = 0, IN_FEATURE                       # [512, 256]
_W2_LO, _W2_HI = _W1_HI, _W1_HI + HIDDEN             # [256, 256]
_W3_LO, _W3_HI = _W2_HI, _W2_HI + HIDDEN             # [256, 256]
_WH_LO, _WH_HI = _W3_HI, _W3_HI + HIDDEN             # [256, 256]  (mu | var)
_W_ROWS = _WH_HI                                     # 1280

# Row indices inside the packed [8, 256] vector slab.
_G_ROW = (0, 1, 2)            # gammas
_B_ROW = (3, 4, 5)            # betas
_HB_ROW = 6                   # fused head bias (bmu | bvar)


def _vae_encoder_kernel(x_ref, w_ref, v_ref, eps_ref, out_ref):
    def lin_bn_lrelu(h, w_lo, w_hi, g_row, b_row):
        # Linear (bias omitted: cancelled by train-mode BN mean subtraction).
        y = jnp.dot(h.astype(jnp.bfloat16), w_ref[w_lo:w_hi, :],
                    preferred_element_type=jnp.float32)
        # BatchNorm1d (training mode, biased batch stats) folded to scale/shift.
        mean = jnp.mean(y, axis=0, keepdims=True)
        centered = y - mean
        var = jnp.mean(centered * centered, axis=0, keepdims=True)
        scale = v_ref[g_row:g_row + 1, :] * lax.rsqrt(var + BN_EPS)
        shift = v_ref[b_row:b_row + 1, :] - mean * scale
        y = y * scale + shift
        # LeakyReLU (default slope 0.01)
        return jnp.where(y > 0, y, LRELU_SLOPE * y)

    h = x_ref[...].astype(jnp.float32)
    h = lin_bn_lrelu(h, _W1_LO, _W1_HI, _G_ROW[0], _B_ROW[0])
    h = lin_bn_lrelu(h, _W2_LO, _W2_HI, _G_ROW[1], _B_ROW[1])
    h = lin_bn_lrelu(h, _W3_LO, _W3_HI, _G_ROW[2], _B_ROW[2])

    # Fused mu/logvar head: one 256-wide matmul, split columns afterwards.
    head = jnp.dot(h.astype(jnp.bfloat16), w_ref[_WH_LO:_WH_HI, :],
                   preferred_element_type=jnp.float32) + v_ref[_HB_ROW:_HB_ROW + 1, :]
    mu = head[:, :OUT_FEATURE]
    logvar = head[:, OUT_FEATURE:]

    # reparameterize: z = eps * exp(0.5 * logvar) + mu   (exp on the EUP)
    z = eps_ref[...] * jnp.exp(0.5 * logvar) + mu

    # Single lane-dense [N, 384] writeback: z | mu | logvar.
    out_ref[...] = jnp.concatenate([z, mu, logvar], axis=-1).astype(out_ref.dtype)


def vae_encoder_forward(x, params, eps):
    """x: [N, IN_FEATURE] f32; eps: [N, OUT_FEATURE] f32.  Returns (z, mu, logvar)."""
    n = x.shape[0]
    assert x.shape == (n, IN_FEATURE) and eps.shape == (n, OUT_FEATURE)

    vmem_spec = pl.BlockSpec(memory_space=pltpu.MemorySpace.VMEM)
    out = pl.pallas_call(
        _vae_encoder_kernel,
        out_shape=jax.ShapeDtypeStruct((n, 3 * OUT_FEATURE), jnp.float32),
        in_specs=[vmem_spec, vmem_spec, vmem_spec, vmem_spec],
        out_specs=vmem_spec,
        compiler_params=pltpu.CompilerParams(vmem_limit_bytes=32 * 1024 * 1024),
    )(x, params["w_slab"], params["v_slab"], eps)

    z = out[:, :OUT_FEATURE]
    mu = out[:, OUT_FEATURE:2 * OUT_FEATURE]
    logvar = out[:, 2 * OUT_FEATURE:]
    return z, mu, logvar


def _xavier_uniform(key, fan_in, fan_out, gain=1.0):
    bound = gain * jnp.sqrt(6.0 / (fan_in + fan_out))
    # Stored as [fan_in, fan_out] (transpose of the PyTorch [out,in] layout).
    return jax.random.uniform(key, (fan_in, fan_out), jnp.float32, -bound, bound)


def init_params(key):
    ks = jax.random.split(key, 5)
    w1 = _xavier_uniform(ks[0], IN_FEATURE, HIDDEN)
    w2 = _xavier_uniform(ks[1], HIDDEN, HIDDEN)
    w3 = _xavier_uniform(ks[2], HIDDEN, HIDDEN)
    wmu = _xavier_uniform(ks[3], HIDDEN, OUT_FEATURE)
    wvar = _xavier_uniform(ks[4], HIDDEN, OUT_FEATURE)
    whead = jnp.concatenate([wmu, wvar], axis=1)                     # [256, 256]

    # Packed bf16 weight slab: [1280, 256].
    w_slab = jnp.concatenate([w1, w2, w3, whead], axis=0).astype(jnp.bfloat16)
    assert w_slab.shape == (_W_ROWS, HIDDEN)

    # Packed f32 vector slab [8, 256]:
    #   rows 0..2 gammas (=1), rows 3..5 betas (=0), row 6 head bias (=0 per
    #   weights_init), row 7 padding.  Pre-BN linear biases are omitted entirely
    #   (mathematically dead under train-mode BatchNorm).
    v_slab = jnp.zeros((8, HIDDEN), jnp.float32)
    v_slab = v_slab.at[0:3, :].set(1.0)

    return {"w_slab": w_slab, "v_slab": v_slab}


def _reference(x, params, eps):
    """Pure-JAX reference using the same bf16 weight / bf16 MXU-input rounding."""
    w = params["w_slab"]
    v = params["v_slab"]
    w1 = w[_W1_LO:_W1_HI]
    w2 = w[_W2_LO:_W2_HI]
    w3 = w[_W3_LO:_W3_HI]
    wh = w[_WH_LO:_WH_HI]

    def mm(h, wmat):
        return jnp.dot(h.astype(jnp.bfloat16), wmat,
                       preferred_element_type=jnp.float32)

    def block(h, wmat, g, be):
        y = mm(h, wmat)
        mean = jnp.mean(y, axis=0, keepdims=True)
        var = jnp.mean((y - mean) ** 2, axis=0, keepdims=True)
        y = (y - mean) * lax.rsqrt(var + BN_EPS) * g + be
        return jnp.where(y > 0, y, LRELU_SLOPE * y)

    h = block(x, w1, v[0:1], v[3:4])
    h = block(h, w2, v[1:2], v[4:5])
    h = block(h, w3, v[2:3], v[5:6])
    head = mm(h, wh) + v[_HB_ROW:_HB_ROW + 1]
    mu = head[:, :OUT_FEATURE]
    logvar = head[:, OUT_FEATURE:]
    z = eps * jnp.exp(0.5 * logvar) + mu
    return z, mu, logvar


if __name__ == "__main__":
    key = jax.random.PRNGKey(0)
    k_x, k_p, k_eps = jax.random.split(key, 3)

    batch = 8
    x = jax.random.normal(k_x, (batch, IN_FEATURE), jnp.float32)
    params = init_params(k_p)
    eps = jax.random.normal(k_eps, (batch, OUT_FEATURE), jnp.float32)

    z, mu, logvar = vae_encoder_forward(x, params, eps)
    jax.block_until_ready((z, mu, logvar))

    z_ref, mu_ref, lv_ref = _reference(x, params, eps)
    assert jnp.allclose(mu, mu_ref, atol=2e-3, rtol=2e-3)
    assert jnp.allclose(logvar, lv_ref, atol=2e-3, rtol=2e-3)
    assert jnp.allclose(z, z_ref, atol=2e-3, rtol=2e-3)

    print("KERNEL_OK")
</pallas_src>

<mosaic_0001>
module attributes {stable_mosaic.version = 11 : i64} {
  func.func @_vae_encoder_kernel(%arg0: memref<8x512xf32, #tpu.memory_space<vmem>>, %arg1: memref<1280x256xbf16, #tpu.memory_space<vmem>>, %arg2: memref<8x256xf32, #tpu.memory_space<vmem>>, %arg3: memref<8x128xf32, #tpu.memory_space<vmem>>, %arg4: memref<8x384xf32, #tpu.memory_space<vmem>>) attributes {dimension_semantics = [], scalar_prefetch = 0 : i64, scratch_operands = 0 : i64, tpu.core_type = #tpu.core_type<tc>} {
    %c0 = arith.constant 0 : index
    %c0_0 = arith.constant 0 : index
    %0 = vector.load %arg0[%c0, %c0_0] : memref<8x512xf32, #tpu.memory_space<vmem>>, vector<8x512xf32>
    %1 = arith.truncf %0 : vector<8x512xf32> to vector<8x512xbf16>
    %c0_1 = arith.constant 0 : index
    %c0_2 = arith.constant 0 : index
    %2 = vector.load %arg1[%c0_1, %c0_2] : memref<1280x256xbf16, #tpu.memory_space<vmem>>, vector<512x256xbf16>
    %cst = arith.constant dense<0.000000e+00> : vector<8x256xf32>
    %3 = tpu.matmul %1, %2, %cst {dimension_numbers = #tpu.dot_dimension_numbers<[1], [0], [0], [1], [0, 0, 1, 1], [], []>} : vector<8x512xbf16>, vector<512x256xbf16>, vector<8x256xf32> -> vector<8x256xf32>
    %cst_3 = arith.constant dense<0.000000e+00> : vector<256xf32>
    %4 = vector.multi_reduction <add>, %3, %cst_3 [0] : vector<8x256xf32> to vector<256xf32>
    %5 = vector.shape_cast %4 : vector<256xf32> to vector<1x256xf32>
    %cst_4 = arith.constant 8.000000e+00 : f32
    %6 = vector.broadcast %cst_4 : f32 to vector<1x256xf32>
    %7 = arith.divf %5, %6 : vector<1x256xf32>
    %8 = vector.broadcast %7 : vector<1x256xf32> to vector<8x256xf32>
    %9 = arith.subf %3, %8 : vector<8x256xf32>
    %10 = arith.mulf %9, %9 : vector<8x256xf32>
    %cst_5 = arith.constant dense<0.000000e+00> : vector<256xf32>
    %11 = vector.multi_reduction <add>, %10, %cst_5 [0] : vector<8x256xf32> to vector<256xf32>
    %12 = vector.shape_cast %11 : vector<256xf32> to vector<1x256xf32>
    %cst_6 = arith.constant 8.000000e+00 : f32
    %13 = vector.broadcast %cst_6 : f32 to vector<1x256xf32>
    %14 = arith.divf %12, %13 : vector<1x256xf32>
    %c0_7 = arith.constant 0 : index
    %c0_8 = arith.constant 0 : index
    %15 = vector.load %arg2[%c0_7, %c0_8] : memref<8x256xf32, #tpu.memory_space<vmem>>, vector<1x256xf32>
    %cst_9 = arith.constant 9.99999974E-6 : f32
    %16 = vector.broadcast %cst_9 : f32 to vector<1x256xf32>
    %17 = arith.addf %14, %16 : vector<1x256xf32>
    %18 = math.rsqrt %17 : vector<1x256xf32>
    %19 = arith.mulf %15, %18 : vector<1x256xf32>
    %c3 = arith.constant 3 : index
    %c0_10 = arith.constant 0 : index
    %20 = vector.load %arg2[%c3, %c0_10] : memref<8x256xf32, #tpu.memory_space<vmem>>, vector<1x256xf32>
    %21 = arith.mulf %7, %19 : vector<1x256xf32>
    %22 = arith.subf %20, %21 : vector<1x256xf32>
    %23 = vector.broadcast %19 : vector<1x256xf32> to vector<8x256xf32>
    %24 = arith.mulf %3, %23 : vector<8x256xf32>
    %25 = vector.broadcast %22 : vector<1x256xf32> to vector<8x256xf32>
    %26 = arith.addf %24, %25 : vector<8x256xf32>
    %cst_11 = arith.constant 0.000000e+00 : f32
    %27 = vector.broadcast %cst_11 : f32 to vector<8x256xf32>
    %28 = arith.cmpf ogt, %26, %27 : vector<8x256xf32>
    %cst_12 = arith.constant 0.00999999977 : f32
    %29 = vector.broadcast %cst_12 : f32 to vector<8x256xf32>
    %30 = arith.mulf %29, %26 : vector<8x256xf32>
    %31 = arith.select %28, %26, %30 : vector<8x256xi1>, vector<8x256xf32>
    %32 = arith.truncf %31 : vector<8x256xf32> to vector<8x256xbf16>
    %c512 = arith.constant 512 : index
    %c0_13 = arith.constant 0 : index
    %33 = vector.load %arg1[%c512, %c0_13] : memref<1280x256xbf16, #tpu.memory_space<vmem>>, vector<256x256xbf16>
    %cst_14 = arith.constant dense<0.000000e+00> : vector<8x256xf32>
    %34 = tpu.matmul %32, %33, %cst_14 {dimension_numbers = #tpu.dot_dimension_numbers<[1], [0], [0], [1], [0, 0, 1, 1], [], []>} : vector<8x256xbf16>, vector<256x256xbf16>, vector<8x256xf32> -> vector<8x256xf32>
    %cst_15 = arith.constant dense<0.000000e+00> : vector<256xf32>
    %35 = vector.multi_reduction <add>, %34, %cst_15 [0] : vector<8x256xf32> to vector<256xf32>
    %36 = vector.shape_cast %35 : vector<256xf32> to vector<1x256xf32>
    %cst_16 = arith.constant 8.000000e+00 : f32
    %37 = vector.broadcast %cst_16 : f32 to vector<1x256xf32>
    %38 = arith.divf %36, %37 : vector<1x256xf32>
    %39 = vector.broadcast %38 : vector<1x256xf32> to vector<8x256xf32>
    %40 = arith.subf %34, %39 : vector<8x256xf32>
    %41 = arith.mulf %40, %40 : vector<8x256xf32>
    %cst_17 = arith.constant dense<0.000000e+00> : vector<256xf32>
    %42 = vector.multi_reduction <add>, %41, %cst_17 [0] : vector<8x256xf32> to vector<256xf32>
    %43 = vector.shape_cast %42 : vector<256xf32> to vector<1x256xf32>
    %cst_18 = arith.constant 8.000000e+00 : f32
    %44 = vector.broadcast %cst_18 : f32 to vector<1x256xf32>
    %45 = arith.divf %43, %44 : vector<1x256xf32>
    %c1 = arith.constant 1 : index
    %c0_19 = arith.constant 0 : index
    %46 = vector.load %arg2[%c1, %c0_19] : memref<8x256xf32, #tpu.memory_space<vmem>>, vector<1x256xf32>
    %cst_20 = arith.constant 9.99999974E-6 : f32
    %47 = vector.broadcast %cst_20 : f32 to vector<1x256xf32>
    %48 = arith.addf %45, %47 : vector<1x256xf32>
    %49 = math.rsqrt %48 : vector<1x256xf32>
    %50 = arith.mulf %46, %49 : vector<1x256xf32>
    %c4 = arith.constant 4 : index
    %c0_21 = arith.constant 0 : index
    %51 = vector.load %arg2[%c4, %c0_21] : memref<8x256xf32, #tpu.memory_space<vmem>>, vector<1x256xf32>
    %52 = arith.mulf %38, %50 : vector<1x256xf32>
    %53 = arith.subf %51, %52 : vector<1x256xf32>
    %54 = vector.broadcast %50 : vector<1x256xf32> to vector<8x256xf32>
    %55 = arith.mulf %34, %54 : vector<8x256xf32>
    %56 = vector.broadcast %53 : vector<1x256xf32> to vector<8x256xf32>
    %57 = arith.addf %55, %56 : vector<8x256xf32>
    %cst_22 = arith.constant 0.000000e+00 : f32
    %58 = vector.broadcast %cst_22 : f32 to vector<8x256xf32>
    %59 = arith.cmpf ogt, %57, %58 : vector<8x256xf32>
    %cst_23 = arith.constant 0.00999999977 : f32
    %60 = vector.broadcast %cst_23 : f32 to vector<8x256xf32>
    %61 = arith.mulf %60, %57 : vector<8x256xf32>
    %62 = arith.select %59, %57, %61 : vector<8x256xi1>, vector<8x256xf32>
    %63 = arith.truncf %62 : vector<8x256xf32> to vector<8x256xbf16>
    %c768 = arith.constant 768 : index
    %c0_24 = arith.constant 0 : index
    %64 = vector.load %arg1[%c768, %c0_24] : memref<1280x256xbf16, #tpu.memory_space<vmem>>, vector<256x256xbf16>
    %cst_25 = arith.constant dense<0.000000e+00> : vector<8x256xf32>
    %65 = tpu.matmul %63, %64, %cst_25 {dimension_numbers = #tpu.dot_dimension_numbers<[1], [0], [0], [1], [0, 0, 1, 1], [], []>} : vector<8x256xbf16>, vector<256x256xbf16>, vector<8x256xf32> -> vector<8x256xf32>
    %cst_26 = arith.constant dense<0.000000e+00> : vector<256xf32>
    %66 = vector.multi_reduction <add>, %65, %cst_26 [0] : vector<8x256xf32> to vector<256xf32>
    %67 = vector.shape_cast %66 : vector<256xf32> to vector<1x256xf32>
    %cst_27 = arith.constant 8.000000e+00 : f32
    %68 = vector.broadcast %cst_27 : f32 to vector<1x256xf32>
    %69 = arith.divf %67, %68 : vector<1x256xf32>
    %70 = vector.broadcast %69 : vector<1x256xf32> to vector<8x256xf32>
    %71 = arith.subf %65, %70 : vector<8x256xf32>
    %72 = arith.mulf %71, %71 : vector<8x256xf32>
    %cst_28 = arith.constant dense<0.000000e+00> : vector<256xf32>
    %73 = vector.multi_reduction <add>, %72, %cst_28 [0] : vector<8x256xf32> to vector<256xf32>
    %74 = vector.shape_cast %73 : vector<256xf32> to vector<1x256xf32>
    %cst_29 = arith.constant 8.000000e+00 : f32
    %75 = vector.broadcast %cst_29 : f32 to vector<1x256xf32>
    %76 = arith.divf %74, %75 : vector<1x256xf32>
    %c2 = arith.constant 2 : index
    %c0_30 = arith.constant 0 : index
    %77 = vector.load %arg2[%c2, %c0_30] : memref<8x256xf32, #tpu.memory_space<vmem>>, vector<1x256xf32>
    %cst_31 = arith.constant 9.99999974E-6 : f32
    %78 = vector.broadcast %cst_31 : f32 to vector<1x256xf32>
    %79 = arith.addf %76, %78 : vector<1x256xf32>
    %80 = math.rsqrt %79 : vector<1x256xf32>
    %81 = arith.mulf %77, %80 : vector<1x256xf32>
    %c5 = arith.constant 5 : index
    %c0_32 = arith.constant 0 : index
    %82 = vector.load %arg2[%c5, %c0_32] : memref<8x256xf32, #tpu.memory_space<vmem>>, vector<1x256xf32>
    %83 = arith.mulf %69, %81 : vector<1x256xf32>
    %84 = arith.subf %82, %83 : vector<1x256xf32>
    %85 = vector.broadcast %81 : vector<1x256xf32> to vector<8x256xf32>
    %86 = arith.mulf %65, %85 : vector<8x256xf32>
    %87 = vector.broadcast %84 : vector<1x256xf32> to vector<8x256xf32>
    %88 = arith.addf %86, %87 : vector<8x256xf32>
    %cst_33 = arith.constant 0.000000e+00 : f32
    %89 = vector.broadcast %cst_33 : f32 to vector<8x256xf32>
    %90 = arith.cmpf ogt, %88, %89 : vector<8x256xf32>
    %cst_34 = arith.constant 0.00999999977 : f32
    %91 = vector.broadcast %cst_34 : f32 to vector<8x256xf32>
    %92 = arith.mulf %91, %88 : vector<8x256xf32>
    %93 = arith.select %90, %88, %92 : vector<8x256xi1>, vector<8x256xf32>
    %94 = arith.truncf %93 : vector<8x256xf32> to vector<8x256xbf16>
    %c1024 = arith.constant 1024 : index
    %c0_35 = arith.constant 0 : index
    %95 = vector.load %arg1[%c1024, %c0_35] : memref<1280x256xbf16, #tpu.memory_space<vmem>>, vector<256x256xbf16>
    %cst_36 = arith.constant dense<0.000000e+00> : vector<8x256xf32>
    %96 = tpu.matmul %94, %95, %cst_36 {dimension_numbers = #tpu.dot_dimension_numbers<[1], [0], [0], [1], [0, 0, 1, 1], [], []>} : vector<8x256xbf16>, vector<256x256xbf16>, vector<8x256xf32> -> vector<8x256xf32>
    %c6 = arith.constant 6 : index
    %c0_37 = arith.constant 0 : index
    %97 = vector.load %arg2[%c6, %c0_37] : memref<8x256xf32, #tpu.memory_space<vmem>>, vector<1x256xf32>
    %98 = vector.broadcast %97 : vector<1x256xf32> to vector<8x256xf32>
    %99 = arith.addf %96, %98 : vector<8x256xf32>
    %100 = vector.extract_strided_slice %99 {offsets = [0, 0], sizes = [8, 128], strides = [1, 1]} : vector<8x256xf32> to vector<8x128xf32>
    %101 = vector.extract_strided_slice %99 {offsets = [0, 128], sizes = [8, 128], strides = [1, 1]} : vector<8x256xf32> to vector<8x128xf32>
    %c0_38 = arith.constant 0 : index
    %c0_39 = arith.constant 0 : index
    %102 = vector.load %arg3[%c0_38, %c0_39] : memref<8x128xf32, #tpu.memory_space<vmem>>, vector<8x128xf32>
    %cst_40 = arith.constant 5.000000e-01 : f32
    %103 = vector.broadcast %cst_40 : f32 to vector<8x128xf32>
    %104 = arith.mulf %103, %101 : vector<8x128xf32>
    %105 = math.exp %104 : vector<8x128xf32>
    %106 = arith.mulf %102, %105 : vector<8x128xf32>
    %107 = arith.addf %106, %100 : vector<8x128xf32>
    %108 = tpu.concatenate %107, %100, %101 in 1 : vector<8x128xf32>, vector<8x128xf32>, vector<8x128xf32> -> vector<8x384xf32>
    %c0_41 = arith.constant 0 : index
    %c0_42 = arith.constant 0 : index
    %109 = vector.load %arg4[%c0_41, %c0_42] : memref<8x384xf32, #tpu.memory_space<vmem>>, vector<8x384xf32>
    tpu.vector_store %arg4[%c0_41, %c0_42], %108 {strides = array<i32>} : memref<8x384xf32, #tpu.memory_space<vmem>>, vector<8x384xf32>,
    return
  }
}

</mosaic_0001>

<llo_original>
// kernel: tpu_custom_call.1
$region0: #{tpu_custom_call.1}
  #allocation0 [shape = 'u32[]', space=smem, size = 0x4, offset = 0x4, fixed_abs, tag = 'smem constant byte address 0x4 - core index']
  #allocation1 [shape = 'u32[144,128]{1,0:T(1,128)}', space=vmem, size = 0x12000, scoped, tag = 'internal scratch']
  %s0 = inlined_call_operand.hbm [shape: f32[8,512], index: 0, kind: input, shape index: {}]
  %s1 = inlined_call_operand.hbm [shape: bf16[1280,256], index: 1, kind: input, shape index: {}]
  %s2 = inlined_call_operand.hbm [shape: f32[8,256], index: 2, kind: input, shape index: {}]
  %s3 = inlined_call_operand.vmem [shape: f32[8,128], index: 3, kind: input, shape index: {}]
  %s4 = inlined_call_operand.hbm [shape: f32[8,384], index: 4, kind: output, shape index: {}]
  %s5 = sld [smem:[#allocation0]]
  $region38: #{tpu_custom_call.1} parent=0
    _
  %s7 = ssub.s32 1, %s5
  %s8 = scalar_select 0, %s7, %s5
  $region1: #{tpu_custom_call.1} parent=0
    #allocation2 [shape = 'u8[16384]{0}', space=vmem, size = 0x4000, scoped, tag = 'input window, operand 0, single buffered']
    #allocation3 [shape = 's32[1]{0}', space=sflag, size = 0x4, scoped, tag = 'scoped memory for tpu_custom_call.1']
    #allocation4 [shape = 's32[1]{0}', space=sflag, size = 0x4, scoped, tag = 'scoped memory for tpu_custom_call.1']
    #allocation5 [shape = 'u8[655360]{0}', space=vmem, size = 0xa0000, scoped, tag = 'input window, operand 1, single buffered']
    #allocation6 [shape = 's32[1]{0}', space=sflag, size = 0x4, scoped, tag = 'scoped memory for tpu_custom_call.1']
    #allocation7 [shape = 'u8[8192]{0}', space=vmem, size = 0x2000, scoped, tag = 'input window, operand 2, single buffered']
    #allocation8 [shape = 'u8[12288]{0}', space=vmem, size = 0x3000, scoped, tag = 'output window, operand 0, single buffered']
    %9 = vsyncpa [#allocation3], 0
    %10 = vsyncpa [#allocation6], 0
    %11 = vsyncpa [#allocation4], 0
    // Predicated region
    $region2: #{tpu_custom_call.1} parent=1 // pred_check
      _
    $region3: #{tpu_custom_call.1} parent=1 // pred_check_branch
      %13 = sbr.rel (0) target = $region5
    $region4: #{tpu_custom_call.1} parent=1 // pred_region
      %s15 = ssub.s32 512, 512
      %16 = vsyncadd [#allocation3], %s15
      %s18 = sshll.u32 [#allocation2], 4
      %s19 = int_to_ptr.vmem [resolvable:$true] %s18
      %21 = dma.hbm_to_vmem [thread:$0]  %s0, 512, %s19, [#allocation3]
    $region5: #{tpu_custom_call.1} parent=1 // pred_fallthru
      _
    // Predicated region
    $region6: #{tpu_custom_call.1} parent=1 // pred_check
      _
    $region7: #{tpu_custom_call.1} parent=1 // pred_check_branch
      %23 = sbr.rel (0) target = $region9
    $region8: #{tpu_custom_call.1} parent=1 // pred_region
      %s25 = ssub.s32 20480, 20480
      %26 = vsyncadd [#allocation6], %s25
      %s27 = sshll.u32 [#allocation5], 4
      %s28 = int_to_ptr.vmem [resolvable:$true] %s27
      %33 = dma.hbm_to_vmem [thread:$0]  %s1, 20480, %s28, [#allocation6], 128, 128, 8
    $region9: #{tpu_custom_call.1} parent=1 // pred_fallthru
      _
    // Predicated region
    $region10: #{tpu_custom_call.1} parent=1 // pred_check
      _
    $region11: #{tpu_custom_call.1} parent=1 // pred_check_branch
      %35 = sbr.rel (0) target = $region13
    $region12: #{tpu_custom_call.1} parent=1 // pred_region
      %s37 = ssub.s32 256, 256
      %38 = vsyncadd [#allocation6], %s37
      %s40 = sshll.u32 [#allocation7], 4
      %s41 = int_to_ptr.vmem [resolvable:$true] %s40
      %43 = dma.hbm_to_vmem [thread:$0]  %s2, 256, %s41, [#allocation6]
    $region13: #{tpu_custom_call.1} parent=1 // pred_fallthru
      _
    // Predicated region
    $region14: #{tpu_custom_call.1} parent=1 // pred_check
      _
    $region15: #{tpu_custom_call.1} parent=1 // pred_check_branch
      %45 = sbr.rel (0) target = $region17
    $region16: #{tpu_custom_call.1} parent=1 // pred_region
      _
    $region17: #{tpu_custom_call.1} parent=1 // pred_fallthru
      _
    // Predicated region
    $region18: #{tpu_custom_call.1} parent=1 // pred_check
      _
    $region19: #{tpu_custom_call.1} parent=1 // pred_check_branch
      %47 = sbr.rel (0) target = $region21
    $region20: #{tpu_custom_call.1} parent=1 // pred_region
      %48 = dma.done [#allocation3], 512
    $region21: #{tpu_custom_call.1} parent=1 // pred_fallthru
      _
    // Predicated region
    $region22: #{tpu_custom_call.1} parent=1 // pred_check
      _
    $region23: #{tpu_custom_call.1} parent=1 // pred_check_branch
      %50 = sbr.rel (0) target = $region25
    $region24: #{tpu_custom_call.1} parent=1 // pred_region
      %51 = dma.done [#allocation6], 20480
    $region25: #{tpu_custom_call.1} parent=1 // pred_fallthru
      _
    // Predicated region
    $region26: #{tpu_custom_call.1} parent=1 // pred_check
      _
    $region27: #{tpu_custom_call.1} parent=1 // pred_check_branch
      %53 = sbr.rel (0) target = $region29
    $region28: #{tpu_custom_call.1} parent=1 // pred_region
      %54 = dma.done [#allocation6], 256
    $region29: #{tpu_custom_call.1} parent=1 // pred_fallthru
      _
    %v55 = vld [vmem:[#allocation2] sm:$0xff]
    %v56 = vld [vmem:[#allocation2 + $0x8] sm:$0xff]
    %v57 = vld [vmem:[#allocation2 + $0x10] sm:$0xff]
    %v58 = vld [vmem:[#allocation2 + $0x18] sm:$0xff]
    %v59 = vpack.c.bf16 %v55, %v55
    %v60 = vpack.c.bf16 %v56, %v56
    %v61 = vpack.c.bf16 %v57, %v57
    %v62 = vpack.c.bf16 %v58, %v58
    %v63 = vld [vmem:[#allocation5] sm:$0xff]
    %v64 = vld [vmem:[#allocation5 + $0x8] sm:$0xff]
    %v65 = vld [vmem:[#allocation5 + $0x10] sm:$0xff]
    %v66 = vld [vmem:[#allocation5 + $0x18] sm:$0xff]
    %v67 = vld [vmem:[#allocation5 + $0x20] sm:$0xff]
    %v68 = vld [vmem:[#allocation5 + $0x28] sm:$0xff]
    %v69 = vld [vmem:[#allocation5 + $0x30] sm:$0xff]
    %v70 = vld [vmem:[#allocation5 + $0x38] sm:$0xff]
    %v71 = vld [vmem:[#allocation5 + $0x40] sm:$0xff]
    %v72 = vld [vmem:[#allocation5 + $0x48] sm:$0xff]
    %v73 = vld [vmem:[#allocation5 + $0x50] sm:$0xff]
    %v74 = vld [vmem:[#allocation5 + $0x58] sm:$0xff]
    %v75 = vld [vmem:[#allocation5 + $0x60] sm:$0xff]
    %v76 = vld [vmem:[#allocation5 + $0x68] sm:$0xff]
    %v77 = vld [vmem:[#allocation5 + $0x70] sm:$0xff]
    %v78 = vld [vmem:[#allocation5 + $0x78] sm:$0xff]
    %v79 = vld [vmem:[#allocation5 + $0x80] sm:$0xff]
    %v80 = vld [vmem:[#allocation5 + $0x88] sm:$0xff]
    %v81 = vld [vmem:[#allocation5 + $0x90] sm:$0xff]
    %v82 = vld [vmem:[#allocation5 + $0x98] sm:$0xff]
    %v83 = vld [vmem:[#allocation5 + $0xa0] sm:$0xff]
    %v84 = vld [vmem:[#allocation5 + $0xa8] sm:$0xff]
    %v85 = vld [vmem:[#allocation5 + $0xb0] sm:$0xff]
    %v86 = vld [vmem:[#allocation5 + $0xb8] sm:$0xff]
    %v87 = vld [vmem:[#allocation5 + $0xc0] sm:$0xff]
    %v88 = vld [vmem:[#allocation5 + $0xc8] sm:$0xff]
    %v89 = vld [vmem:[#allocation5 + $0xd0] sm:$0xff]
    %v90 = vld [vmem:[#allocation5 + $0xd8] sm:$0xff]
    %v91 = vld [vmem:[#allocation5 + $0xe0] sm:$0xff]
    %v92 = vld [vmem:[#allocation5 + $0xe8] sm:$0xff]
    %v93 = vld [vmem:[#allocation5 + $0xf0] sm:$0xff]
    %v94 = vld [vmem:[#allocation5 + $0xf8] sm:$0xff]
    %v95 = vld [vmem:[#allocation5 + $0x100] sm:$0xff]
    %v96 = vld [vmem:[#allocation5 + $0x108] sm:$0xff]
    %v97 = vld [vmem:[#allocation5 + $0x110] sm:$0xff]
    %v98 = vld [vmem:[#allocation5 + $0x118] sm:$0xff]
    %v99 = vld [vmem:[#allocation5 + $0x120] sm:$0xff]
    %v100 = vld [vmem:[#allocation5 + $0x128] sm:$0xff]
    %v101 = vld [vmem:[#allocation5 + $0x130] sm:$0xff]
    %v102 = vld [vmem:[#allocation5 + $0x138] sm:$0xff]
    %v103 = vld [vmem:[#allocation5 + $0x140] sm:$0xff]
    %v104 = vld [vmem:[#allocation5 + $0x148] sm:$0xff]
    %v105 = vld [vmem:[#allocation5 + $0x150] sm:$0xff]
    %v106 = vld [vmem:[#allocation5 + $0x158] sm:$0xff]
    %v107 = vld [vmem:[#allocation5 + $0x160] sm:$0xff]
    %v108 = vld [vmem:[#allocation5 + $0x168] sm:$0xff]
    %v109 = vld [vmem:[#allocation5 + $0x170] sm:$0xff]
    %v110 = vld [vmem:[#allocation5 + $0x178] sm:$0xff]
    %v111 = vld [vmem:[#allocation5 + $0x180] sm:$0xff]
    %v112 = vld [vmem:[#allocation5 + $0x188] sm:$0xff]
    %v113 = vld [vmem:[#allocation5 + $0x190] sm:$0xff]
    %v114 = vld [vmem:[#allocation5 + $0x198] sm:$0xff]
    %v115 = vld [vmem:[#allocation5 + $0x1a0] sm:$0xff]
    %v116 = vld [vmem:[#allocation5 + $0x1a8] sm:$0xff]
    %v117 = vld [vmem:[#allocation5 + $0x1b0] sm:$0xff]
    %v118 = vld [vmem:[#allocation5 + $0x1b8] sm:$0xff]
    %v119 = vld [vmem:[#allocation5 + $0x1c0] sm:$0xff]
    %v120 = vld [vmem:[#allocation5 + $0x1c8] sm:$0xff]
    %v121 = vld [vmem:[#allocation5 + $0x1d0] sm:$0xff]
    %v122 = vld [vmem:[#allocation5 + $0x1d8] sm:$0xff]
    %v123 = vld [vmem:[#allocation5 + $0x1e0] sm:$0xff]
    %v124 = vld [vmem:[#allocation5 + $0x1e8] sm:$0xff]
    %v125 = vld [vmem:[#allocation5 + $0x1f0] sm:$0xff]
    %v126 = vld [vmem:[#allocation5 + $0x1f8] sm:$0xff]
    %v191 = vunpack.c.l.b16 %v63
    %v192 = vunpack.c.h.b16 %v63
    %v193 = vunpack.c.l.b16 %v64
    %v194 = vunpack.c.h.b16 %v64
    %v195 = vunpack.c.l.b16 %v65
    %v196 = vunpack.c.h.b16 %v65
    %v197 = vunpack.c.l.b16 %v66
    %v198 = vunpack.c.h.b16 %v66
    %v199 = vunpack.c.l.b16 %v67
    %v200 = vunpack.c.h.b16 %v67
    %v201 = vunpack.c.l.b16 %v68
    %v202 = vunpack.c.h.b16 %v68
    %v203 = vunpack.c.l.b16 %v69
    %v204 = vunpack.c.h.b16 %v69
    %v205 = vunpack.c.l.b16 %v70
    %v206 = vunpack.c.h.b16 %v70
    %v207 = vunpack.c.l.b16 %v71
    %v208 = vunpack.c.h.b16 %v71
    %v209 = vunpack.c.l.b16 %v72
    %v210 = vunpack.c.h.b16 %v72
    %v211 = vunpack.c.l.b16 %v73
    %v212 = vunpack.c.h.b16 %v73
    %v213 = vunpack.c.l.b16 %v74
    %v214 = vunpack.c.h.b16 %v74
    %v215 = vunpack.c.l.b16 %v75
    %v216 = vunpack.c.h.b16 %v75
    %v217 = vunpack.c.l.b16 %v76
    %v218 = vunpack.c.h.b16 %v76
    %v219 = vunpack.c.l.b16 %v77
    %v220 = vunpack.c.h.b16 %v77
    %v221 = vunpack.c.l.b16 %v78
    %v222 = vunpack.c.h.b16 %v78
    %v223 = vunpack.c.l.b16 %v79
    %v224 = vunpack.c.h.b16 %v79
    %v225 = vunpack.c.l.b16 %v80
    %v226 = vunpack.c.h.b16 %v80
    %v227 = vunpack.c.l.b16 %v81
    %v228 = vunpack.c.h.b16 %v81
    %v229 = vunpack.c.l.b16 %v82
    %v230 = vunpack.c.h.b16 %v82
    %v231 = vunpack.c.l.b16 %v83
    %v232 = vunpack.c.h.b16 %v83
    %v233 = vunpack.c.l.b16 %v84
    %v234 = vunpack.c.h.b16 %v84
    %v235 = vunpack.c.l.b16 %v85
    %v236 = vunpack.c.h.b16 %v85
    %v237 = vunpack.c.l.b16 %v86
    %v238 = vunpack.c.h.b16 %v86
    %v239 = vunpack.c.l.b16 %v87
    %v240 = vunpack.c.h.b16 %v87
    %v241 = vunpack.c.l.b16 %v88
    %v242 = vunpack.c.h.b16 %v88
    %v243 = vunpack.c.l.b16 %v89
    %v244 = vunpack.c.h.b16 %v89
    %v245 = vunpack.c.l.b16 %v90
    %v246 = vunpack.c.h.b16 %v90
    %v247 = vunpack.c.l.b16 %v91
    %v248 = vunpack.c.h.b16 %v91
    %v249 = vunpack.c.l.b16 %v92
    %v250 = vunpack.c.h.b16 %v92
    %v251 = vunpack.c.l.b16 %v93
    %v252 = vunpack.c.h.b16 %v93
    %v253 = vunpack.c.l.b16 %v94
    %v254 = vunpack.c.h.b16 %v94
    %v255 = vunpack.c.l.b16 %v95
    %v256 = vunpack.c.h.b16 %v95
    %v257 = vunpack.c.l.b16 %v96
    %v258 = vunpack.c.h.b16 %v96
    %v259 = vunpack.c.l.b16 %v97
    %v260 = vunpack.c.h.b16 %v97
    %v261 = vunpack.c.l.b16 %v98
    %v262 = vunpack.c.h.b16 %v98
    %v263 = vunpack.c.l.b16 %v99
    %v264 = vunpack.c.h.b16 %v99
    %v265 = vunpack.c.l.b16 %v100
    %v266 = vunpack.c.h.b16 %v100
    %v267 = vunpack.c.l.b16 %v101
    %v268 = vunpack.c.h.b16 %v101
    %v269 = vunpack.c.l.b16 %v102
    %v270 = vunpack.c.h.b16 %v102
    %v271 = vunpack.c.l.b16 %v103
    %v272 = vunpack.c.h.b16 %v103
    %v273 = vunpack.c.l.b16 %v104
    %v274 = vunpack.c.h.b16 %v104
    %v275 = vunpack.c.l.b16 %v105
    %v276 = vunpack.c.h.b16 %v105
    %v277 = vunpack.c.l.b16 %v106
    %v278 = vunpack.c.h.b16 %v106
    %v279 = vunpack.c.l.b16 %v107
    %v280 = vunpack.c.h.b16 %v107
    %v281 = vunpack.c.l.b16 %v108
    %v282 = vunpack.c.h.b16 %v108
    %v283 = vunpack.c.l.b16 %v109
    %v284 = vunpack.c.h.b16 %v109
    %v285 = vunpack.c.l.b16 %v110
    %v286 = vunpack.c.h.b16 %v110
    %v287 = vunpack.c.l.b16 %v111
    %v288 = vunpack.c.h.b16 %v111
    %v289 = vunpack.c.l.b16 %v112
    %v290 = vunpack.c.h.b16 %v112
    %v291 = vunpack.c.l.b16 %v113
    %v292 = vunpack.c.h.b16 %v113
    %v293 = vunpack.c.l.b16 %v114
    %v294 = vunpack.c.h.b16 %v114
    %v295 = vunpack.c.l.b16 %v115
    %v296 = vunpack.c.h.b16 %v115
    %v297 = vunpack.c.l.b16 %v116
    %v298 = vunpack.c.h.b16 %v116
    %v299 = vunpack.c.l.b16 %v117
    %v300 = vunpack.c.h.b16 %v117
    %v301 = vunpack.c.l.b16 %v118
    %v302 = vunpack.c.h.b16 %v118
    %v303 = vunpack.c.l.b16 %v119
    %v304 = vunpack.c.h.b16 %v119
    %v305 = vunpack.c.l.b16 %v120
    %v306 = vunpack.c.h.b16 %v120
    %v307 = vunpack.c.l.b16 %v121
    %v308 = vunpack.c.h.b16 %v121
    %v309 = vunpack.c.l.b16 %v122
    %v310 = vunpack.c.h.b16 %v122
    %v311 = vunpack.c.l.b16 %v123
    %v312 = vunpack.c.h.b16 %v123
    %v313 = vunpack.c.l.b16 %v124
    %v314 = vunpack.c.h.b16 %v124
    %v315 = vunpack.c.l.b16 %v125
    %v316 = vunpack.c.h.b16 %v125
    %v317 = vunpack.c.l.b16 %v126
    %v318 = vunpack.c.h.b16 %v126
    %v319 = vpack.c.b16 %v193, %v191
    %v320 = vpack.c.b16 %v194, %v192
    %v321 = vpack.c.b16 %v197, %v195
    %v322 = vpack.c.b16 %v198, %v196
    %v323 = vpack.c.b16 %v201, %v199
    %v324 = vpack.c.b16 %v202, %v200
    %v325 = vpack.c.b16 %v205, %v203
    %v326 = vpack.c.b16 %v206, %v204
    %v327 = vpack.c.b16 %v209, %v207
    %v328 = vpack.c.b16 %v210, %v208
    %v329 = vpack.c.b16 %v213, %v211
    %v330 = vpack.c.b16 %v214, %v212
    %v331 = vpack.c.b16 %v217, %v215
    %v332 = vpack.c.b16 %v218, %v216
    %v333 = vpack.c.b16 %v221, %v219
    %v334 = vpack.c.b16 %v222, %v220
    %v335 = vpack.c.b16 %v225, %v223
    %v336 = vpack.c.b16 %v226, %v224
    %v337 = vpack.c.b16 %v229, %v227
    %v338 = vpack.c.b16 %v230, %v228
    %v339 = vpack.c.b16 %v233, %v231
    %v340 = vpack.c.b16 %v234, %v232
    %v341 = vpack.c.b16 %v237, %v235
    %v342 = vpack.c.b16 %v238, %v236
    %v343 = vpack.c.b16 %v241, %v239
    %v344 = vpack.c.b16 %v242, %v240
    %v345 = vpack.c.b16 %v245, %v243
    %v346 = vpack.c.b16 %v246, %v244
    %v347 = vpack.c.b16 %v249, %v247
    %v348 = vpack.c.b16 %v250, %v248
    %v349 = vpack.c.b16 %v253, %v251
    %v350 = vpack.c.b16 %v254, %v252
    %v351 = vpack.c.b16 %v257, %v255
    %v352 = vpack.c.b16 %v258, %v256
    %v353 = vpack.c.b16 %v261, %v259
    %v354 = vpack.c.b16 %v262, %v260
    %v355 = vpack.c.b16 %v265, %v263
    %v356 = vpack.c.b16 %v266, %v264
    %v357 = vpack.c.b16 %v269, %v267
    %v358 = vpack.c.b16 %v270, %v268
    %v359 = vpack.c.b16 %v273, %v271
    %v360 = vpack.c.b16 %v274, %v272
    %v361 = vpack.c.b16 %v277, %v275
    %v362 = vpack.c.b16 %v278, %v276
    %v363 = vpack.c.b16 %v281, %v279
    %v364 = vpack.c.b16 %v282, %v280
    %v365 = vpack.c.b16 %v285, %v283
    %v366 = vpack.c.b16 %v286, %v284
    %v367 = vpack.c.b16 %v289, %v287
    %v368 = vpack.c.b16 %v290, %v288
    %v369 = vpack.c.b16 %v293, %v291
    %v370 = vpack.c.b16 %v294, %v292
    %v371 = vpack.c.b16 %v297, %v295
    %v372 = vpack.c.b16 %v298, %v296
    %v373 = vpack.c.b16 %v301, %v299
    %v374 = vpack.c.b16 %v302, %v300
    %v375 = vpack.c.b16 %v305, %v303
    %v376 = vpack.c.b16 %v306, %v304
    %v377 = vpack.c.b16 %v309, %v307
    %v378 = vpack.c.b16 %v310, %v308
    %v379 = vpack.c.b16 %v313, %v311
    %v380 = vpack.c.b16 %v314, %v312
    %v381 = vpack.c.b16 %v317, %v315
    %v382 = vpack.c.b16 %v318, %v316
    %447 = vmatprep.subr.bf16.mxu0 %v320
    %448 = vmatpush1.bf16.msra.mxu0 %v319
    %449 = vmatprep.subr.bf16.mxu0 %v322
    %450 = vmatpush1.bf16.msra.mxu0 %v321
    %451 = vmatprep.subr.bf16.mxu0 %v324
    %452 = vmatpush1.bf16.msra.mxu0 %v323
    %453 = vmatprep.subr.bf16.mxu0 %v326
    %454 = vmatpush1.bf16.msra.mxu0 %v325
    %455 = vmatprep.subr.bf16.mxu0 %v328
    %456 = vmatpush1.bf16.msra.mxu0 %v327
    %457 = vmatprep.subr.bf16.mxu0 %v330
    %458 = vmatpush1.bf16.msra.mxu0 %v329
    %459 = vmatprep.subr.bf16.mxu0 %v332
    %460 = vmatpush1.bf16.msra.mxu0 %v331
    %461 = vmatprep.subr.bf16.mxu0 %v334
    %462 = vmatpush1.bf16.msra.mxu0 %v333
    %463 = vmatprep.subr.bf16.mxu0 %v336
    %464 = vmatpush1.bf16.msra.mxu0 %v335
    %465 = vmatprep.subr.bf16.mxu0 %v338
    %466 = vmatpush1.bf16.msra.mxu0 %v337
    %467 = vmatprep.subr.bf16.mxu0 %v340
    %468 = vmatpush1.bf16.msra.mxu0 %v339
    %469 = vmatprep.subr.bf16.mxu0 %v342
    %470 = vmatpush1.bf16.msra.mxu0 %v341
    %471 = vmatprep.subr.bf16.mxu0 %v344
    %472 = vmatpush1.bf16.msra.mxu0 %v343
    %473 = vmatprep.subr.bf16.mxu0 %v346
    %474 = vmatpush1.bf16.msra.mxu0 %v345
    %475 = vmatprep.subr.bf16.mxu0 %v348
    %476 = vmatpush1.bf16.msra.mxu0 %v347
    %477 = vmatprep.subr.bf16.mxu0 %v350
    %478 = vmatpush1.bf16.msra.mxu0 %v349
    %479 = vmatprep.mubr.bf16.mxu0 %v60
    %480 = vmatmul.mubr.bf16.gmra.mrb[0].mxu0 %v59
    %v481 = vpop.f32.mrb[0].mxu0
    %v482 = vadd.f32 0.0, %v481
    %v483 = vpop.f32.mrb[0].mxu0
    %v484 = vadd.f32 0.0, %v483
    %v485 = vpop.f32.mrb[0].mxu0
    %v486 = vpop.f32.mrb[0].mxu0
    %487 = vdwg.mxu0
    %488 = vmatprep.subr.bf16.mxu0 %v352
    %489 = vmatpush1.bf16.msra.mxu0 %v351
    %490 = vmatprep.subr.bf16.mxu0 %v354
    %491 = vmatpush1.bf16.msra.mxu0 %v353
    %492 = vmatprep.subr.bf16.mxu0 %v356
    %493 = vmatpush1.bf16.msra.mxu0 %v355
    %494 = vmatprep.subr.bf16.mxu0 %v358
    %495 = vmatpush1.bf16.msra.mxu0 %v357
    %496 = vmatprep.subr.bf16.mxu0 %v360
    %497 = vmatpush1.bf16.msra.mxu0 %v359
    %498 = vmatprep.subr.bf16.mxu0 %v362
    %499 = vmatpush1.bf16.msra.mxu0 %v361
    %500 = vmatprep.subr.bf16.mxu0 %v364
    %501 = vmatpush1.bf16.msra.mxu0 %v363
    %502 = vmatprep.subr.bf16.mxu0 %v366
    %503 = vmatpush1.bf16.msra.mxu0 %v365
    %504 = vmatprep.subr.bf16.mxu0 %v368
    %505 = vmatpush1.bf16.msra.mxu0 %v367
    %506 = vmatprep.subr.bf16.mxu0 %v370
    %507 = vmatpush1.bf16.msra.mxu0 %v369
    %508 = vmatprep.subr.bf16.mxu0 %v372
    %509 = vmatpush1.bf16.msra.mxu0 %v371
    %510 = vmatprep.subr.bf16.mxu0 %v374
    %511 = vmatpush1.bf16.msra.mxu0 %v373
    %512 = vmatprep.subr.bf16.mxu0 %v376
    %513 = vmatpush1.bf16.msra.mxu0 %v375
    %514 = vmatprep.subr.bf16.mxu0 %v378
    %515 = vmatpush1.bf16.msra.mxu0 %v377
    %516 = vmatprep.subr.bf16.mxu0 %v380
    %517 = vmatpush1.bf16.msra.mxu0 %v379
    %518 = vmatprep.subr.bf16.mxu0 %v382
    %519 = vmatpush1.bf16.msra.mxu0 %v381
    %520 = vmatprep.mubr.bf16.mxu0 %v62
    %521 = vmatmul.mubr.bf16.gmra.mrb[0].mxu0 %v61
    %v522 = vpop.f32.mrb[0].mxu0
    %v523 = vadd.f32 %v482, %v522
    %v524 = vpop.f32.mrb[0].mxu0
    %v525 = vadd.f32 %v484, %v524
    %v526 = vpop.f32.mrb[0].mxu0
    %v527 = vpop.f32.mrb[0].mxu0
    %528 = vdwg.mxu0
    %v529 = vrot.slane %v523, 4
    %v530 = vadd.f32 %v523, %v529
    %v531 = vrot.slane %v530, 2
    %v532 = vadd.f32 %v530, %v531
    %v533 = vrot.slane %v532, 1
    %v534 = vadd.f32 %v532, %v533
    %v535 = vrot.slane %v525, 4
    %v536 = vadd.f32 %v525, %v535
    %v537 = vrot.slane %v536, 2
    %v538 = vadd.f32 %v536, %v537
    %v539 = vrot.slane %v538, 1
    %v540 = vadd.f32 %v538, %v539
    %v541 = vrcp.pop 8.0
    %v542 = vmul.f32 %v534, %v541
    %v543 = vmul.f32 %v540, %v541
    %v544 = vsub.f32 %v523, %v542
    %v545 = vsub.f32 %v525, %v543
    %v546 = vmul.f32 %v544, %v544
    %v547 = vmul.f32 %v545, %v545
    %v548 = vrot.slane %v546, 4
    %v549 = vadd.f32 %v546, %v548
    %v550 = vrot.slane %v549, 2
    %v551 = vadd.f32 %v549, %v550
    %v552 = vrot.slane %v551, 1
    %v553 = vadd.f32 %v551, %v552
    %v554 = vrot.slane %v547, 4
    %v555 = vadd.f32 %v547, %v554
    %v556 = vrot.slane %v555, 2
    %v557 = vadd.f32 %v555, %v556
    %v558 = vrot.slane %v557, 1
    %v559 = vadd.f32 %v557, %v558
    %v560 = vmul.f32 %v553, %v541
    %v561 = vmul.f32 %v559, %v541
    %v562 = vld [vmem:[#allocation7] ss:$8 sm:$0x3]
    %v563 = vadd.f32 %v560, 1e-05
    %v564 = vadd.f32 %v561, 1e-05
    %v565 = vrsqrt.pop %v563
    %v566 = vrsqrt.pop %v564
    %v569 = vcombine.low %v565, %v566
    %v571 = vunpack.c.l.s4 1966171168
    %v572 = vunpack.c.0.s8 %v571
    %v573 = vlaneseq
    %v574 = vshrl.u32 %v573, 7
    %v575 = vsub.s32 %v572, %v574
    %v576 = vrot.slane %v569, %v575
    %v578 = vunpack.c.l.s4 1966171168
    %v579 = vunpack.c.0.s8 %v578
    %v580 = vlaneseq
    %v581 = vshrl.u32 %v580, 7
    %v582 = vsub.s32 %v579, %v581
    %v583 = vrot.slane %v576, %v582
    %v585 = vmul.f32 %v562, %v583
    %s586 = scalar_lea.vmem [#allocation7], 3
    %v587 = vld [vmem:[%s586] ss:$8 sm:$0x3]
    %v589 = vlaneseq
    %v590 = vshrl.u32 %v589, 7
    %v591 = vsub.s32 0, %v590
    %v592 = vrot.slane %v585, %v591
    %v593 = vlaneseq
    %v594 = vshrl.u32 %v593, 7
    %v595 = vsub.s32 1, %v594
    %v596 = vrot.slane %v585, %v595
    %v599 = vmul.f32 %v542, %v592
    %v600 = vmul.f32 %v543, %v596
    %v603 = vcombine.low %v599, %v600
    %v605 = vunpack.c.l.s4 1966171168
    %v606 = vunpack.c.0.s8 %v605
    %v607 = vlaneseq
    %v608 = vshrl.u32 %v607, 7
    %v609 = vsub.s32 %v606, %v608
    %v610 = vrot.slane %v603, %v609
    %v612 = vunpack.c.l.s4 1966171168
    %v613 = vunpack.c.0.s8 %v612
    %v614 = vlaneseq
    %v615 = vshrl.u32 %v614, 7
    %v616 = vsub.s32 %v613, %v615
    %v617 = vrot.slane %v610, %v616
    %v619 = vsub.f32 %v587, %v617
    %v620 = vmul.f32 %v523, %v592
    %v621 = vmul.f32 %v525, %v596
    %v623 = vlaneseq
    %v624 = vshrl.u32 %v623, 7
    %v625 = vsub.s32 0, %v624
    %v626 = vrot.slane %v619, %v625
    %v627 = vlaneseq
    %v628 = vshrl.u32 %v627, 7
    %v629 = vsub.s32 1, %v628
    %v630 = vrot.slane %v619, %v629
    %v633 = vadd.f32 %v620, %v626
    %v634 = vadd.f32 %v621, %v630
    %vm635 = vcmp.gt.f32.partialorder %v633, 0.0
    %vm636 = vcmp.gt.f32.partialorder %v634, 0.0
    %v637 = vmul.f32 %v633, 0.01
    %v638 = vmul.f32 %v634, 0.01
    %v639 = vsel %vm635, %v633, %v637
    %v640 = vsel %vm636, %v634, %v638
    %v641 = vpack.c.bf16 %v639, %v639
    %v642 = vpack.c.bf16 %v640, %v640
    %v643 = vld [vmem:[#allocation5 + $0x200] sm:$0xff]
    %v644 = vld [vmem:[#allocation5 + $0x208] sm:$0xff]
    %v645 = vld [vmem:[#allocation5 + $0x210] sm:$0xff]
    %v646 = vld [vmem:[#allocation5 + $0x218] sm:$0xff]
    %v647 = vld [vmem:[#allocation5 + $0x220] sm:$0xff]
    %v648 = vld [vmem:[#allocation5 + $0x228] sm:$0xff]
    %v649 = vld [vmem:[#allocation5 + $0x230] sm:$0xff]
    %v650 = vld [vmem:[#allocation5 + $0x238] sm:$0xff]
    %v651 = vld [vmem:[#allocation5 + $0x240] sm:$0xff]
    %v652 = vld [vmem:[#allocation5 + $0x248] sm:$0xff]
    %v653 = vld [vmem:[#allocation5 + $0x250] sm:$0xff]
    %v654 = vld [vmem:[#allocation5 + $0x258] sm:$0xff]
    %v655 = vld [vmem:[#allocation5 + $0x260] sm:$0xff]
    %v656 = vld [vmem:[#allocation5 + $0x268] sm:$0xff]
    %v657 = vld [vmem:[#allocation5 + $0x270] sm:$0xff]
    %v658 = vld [vmem:[#allocation5 + $0x278] sm:$0xff]
    %v659 = vld [vmem:[#allocation5 + $0x280] sm:$0xff]
    %v660 = vld [vmem:[#allocation5 + $0x288] sm:$0xff]
    %v661 = vld [vmem:[#allocation5 + $0x290] sm:$0xff]
    %v662 = vld [vmem:[#allocation5 + $0x298] sm:$0xff]
    %v663 = vld [vmem:[#allocation5 + $0x2a0] sm:$0xff]
    %v664 = vld [vmem:[#allocation5 + $0x2a8] sm:$0xff]
    %v665 = vld [vmem:[#allocation5 + $0x2b0] sm:$0xff]
    %v666 = vld [vmem:[#allocation5 + $0x2b8] sm:$0xff]
    %v667 = vld [vmem:[#allocation5 + $0x2c0] sm:$0xff]
    %v668 = vld [vmem:[#allocation5 + $0x2c8] sm:$0xff]
    %v669 = vld [vmem:[#allocation5 + $0x2d0] sm:$0xff]
    %v670 = vld [vmem:[#allocation5 + $0x2d8] sm:$0xff]
    %v671 = vld [vmem:[#allocation5 + $0x2e0] sm:$0xff]
    %v672 = vld [vmem:[#allocation5 + $0x2e8] sm:$0xff]
    %v673 = vld [vmem:[#allocation5 + $0x2f0] sm:$0xff]
    %v674 = vld [vmem:[#allocation5 + $0x2f8] sm:$0xff]
    %v707 = vunpack.c.l.b16 %v643
    %v708 = vunpack.c.h.b16 %v643
    %v709 = vunpack.c.l.b16 %v644
    %v710 = vunpack.c.h.b16 %v644
    %v711 = vunpack.c.l.b16 %v645
    %v712 = vunpack.c.h.b16 %v645
    %v713 = vunpack.c.l.b16 %v646
    %v714 = vunpack.c.h.b16 %v646
    %v715 = vunpack.c.l.b16 %v647
    %v716 = vunpack.c.h.b16 %v647
    %v717 = vunpack.c.l.b16 %v648
    %v718 = vunpack.c.h.b16 %v648
    %v719 = vunpack.c.l.b16 %v649
    %v720 = vunpack.c.h.b16 %v649
    %v721 = vunpack.c.l.b16 %v650
    %v722 = vunpack.c.h.b16 %v650
    %v723 = vunpack.c.l.b16 %v651
    %v724 = vunpack.c.h.b16 %v651
    %v725 = vunpack.c.l.b16 %v652
    %v726 = vunpack.c.h.b16 %v652
    %v727 = vunpack.c.l.b16 %v653
    %v728 = vunpack.c.h.b16 %v653
    %v729 = vunpack.c.l.b16 %v654
    %v730 = vunpack.c.h.b16 %v654
    %v731 = vunpack.c.l.b16 %v655
    %v732 = vunpack.c.h.b16 %v655
    %v733 = vunpack.c.l.b16 %v656
    %v734 = vunpack.c.h.b16 %v656
    %v735 = vunpack.c.l.b16 %v657
    %v736 = vunpack.c.h.b16 %v657
    %v737 = vunpack.c.l.b16 %v658
    %v738 = vunpack.c.h.b16 %v658
    %v739 = vunpack.c.l.b16 %v659
    %v740 = vunpack.c.h.b16 %v659
    %v741 = vunpack.c.l.b16 %v660
    %v742 = vunpack.c.h.b16 %v660
    %v743 = vunpack.c.l.b16 %v661
    %v744 = vunpack.c.h.b16 %v661
    %v745 = vunpack.c.l.b16 %v662
    %v746 = vunpack.c.h.b16 %v662
    %v747 = vunpack.c.l.b16 %v663
    %v748 = vunpack.c.h.b16 %v663
    %v749 = vunpack.c.l.b16 %v664
    %v750 = vunpack.c.h.b16 %v664
    %v751 = vunpack.c.l.b16 %v665
    %v752 = vunpack.c.h.b16 %v665
    %v753 = vunpack.c.l.b16 %v666
    %v754 = vunpack.c.h.b16 %v666
    %v755 = vunpack.c.l.b16 %v667
    %v756 = vunpack.c.h.b16 %v667
    %v757 = vunpack.c.l.b16 %v668
    %v758 = vunpack.c.h.b16 %v668
    %v759 = vunpack.c.l.b16 %v669
    %v760 = vunpack.c.h.b16 %v669
    %v761 = vunpack.c.l.b16 %v670
    %v762 = vunpack.c.h.b16 %v670
    %v763 = vunpack.c.l.b16 %v671
    %v764 = vunpack.c.h.b16 %v671
    %v765 = vunpack.c.l.b16 %v672
    %v766 = vunpack.c.h.b16 %v672
    %v767 = vunpack.c.l.b16 %v673
    %v768 = vunpack.c.h.b16 %v673
    %v769 = vunpack.c.l.b16 %v674
    %v770 = vunpack.c.h.b16 %v674
    %v771 = vpack.c.b16 %v709, %v707
    %v772 = vpack.c.b16 %v710, %v708
    %v773 = vpack.c.b16 %v713, %v711
    %v774 = vpack.c.b16 %v714, %v712
    %v775 = vpack.c.b16 %v717, %v715
    %v776 = vpack.c.b16 %v718, %v716
    %v777 = vpack.c.b16 %v721, %v719
    %v778 = vpack.c.b16 %v722, %v720
    %v779 = vpack.c.b16 %v725, %v723
    %v780 = vpack.c.b16 %v726, %v724
    %v781 = vpack.c.b16 %v729, %v727
    %v782 = vpack.c.b16 %v730, %v728
    %v783 = vpack.c.b16 %v733, %v731
    %v784 = vpack.c.b16 %v734, %v732
    %v785 = vpack.c.b16 %v737, %v735
    %v786 = vpack.c.b16 %v738, %v736
    %v787 = vpack.c.b16 %v741, %v739
    %v788 = vpack.c.b16 %v742, %v740
    %v789 = vpack.c.b16 %v745, %v743
    %v790 = vpack.c.b16 %v746, %v744
    %v791 = vpack.c.b16 %v749, %v747
    %v792 = vpack.c.b16 %v750, %v748
    %v793 = vpack.c.b16 %v753, %v751
    %v794 = vpack.c.b16 %v754, %v752
    %v795 = vpack.c.b16 %v757, %v755
    %v796 = vpack.c.b16 %v758, %v756
    %v797 = vpack.c.b16 %v761, %v759
    %v798 = vpack.c.b16 %v762, %v760
    %v799 = vpack.c.b16 %v765, %v763
    %v800 = vpack.c.b16 %v766, %v764
    %v801 = vpack.c.b16 %v769, %v767
    %v802 = vpack.c.b16 %v770, %v768
    %835 = vmatprep.subr.bf16.mxu0 %v772
    %836 = vmatpush1.bf16.msra.mxu0 %v771
    %837 = vmatprep.subr.bf16.mxu0 %v774
    %838 = vmatpush1.bf16.msra.mxu0 %v773
    %839 = vmatprep.subr.bf16.mxu0 %v776
    %840 = vmatpush1.bf16.msra.mxu0 %v775
    %841 = vmatprep.subr.bf16.mxu0 %v778
    %842 = vmatpush1.bf16.msra.mxu0 %v777
    %843 = vmatprep.subr.bf16.mxu0 %v780
    %844 = vmatpush1.bf16.msra.mxu0 %v779
    %845 = vmatprep.subr.bf16.mxu0 %v782
    %846 = vmatpush1.bf16.msra.mxu0 %v781
    %847 = vmatprep.subr.bf16.mxu0 %v784
    %848 = vmatpush1.bf16.msra.mxu0 %v783
    %849 = vmatprep.subr.bf16.mxu0 %v786
    %850 = vmatpush1.bf16.msra.mxu0 %v785
    %851 = vmatprep.subr.bf16.mxu0 %v788
    %852 = vmatpush1.bf16.msra.mxu0 %v787
    %853 = vmatprep.subr.bf16.mxu0 %v790
    %854 = vmatpush1.bf16.msra.mxu0 %v789
    %855 = vmatprep.subr.bf16.mxu0 %v792
    %856 = vmatpush1.bf16.msra.mxu0 %v791
    %857 = vmatprep.subr.bf16.mxu0 %v794
    %858 = vmatpush1.bf16.msra.mxu0 %v793
    %859 = vmatprep.subr.bf16.mxu0 %v796
    %860 = vmatpush1.bf16.msra.mxu0 %v795
    %861 = vmatprep.subr.bf16.mxu0 %v798
    %862 = vmatpush1.bf16.msra.mxu0 %v797
    %863 = vmatprep.subr.bf16.mxu0 %v800
    %864 = vmatpush1.bf16.msra.mxu0 %v799
    %865 = vmatprep.subr.bf16.mxu0 %v802
    %866 = vmatpush1.bf16.msra.mxu0 %v801
    %867 = vmatprep.mubr.bf16.mxu0 %v642
    %868 = vmatmul.mubr.bf16.gmra.mrb[0].mxu0 %v641
    %v869 = vpop.f32.mrb[0].mxu0
    %v870 = vadd.f32 0.0, %v869
    %v871 = vpop.f32.mrb[0].mxu0
    %v872 = vadd.f32 0.0, %v871
    %v873 = vpop.f32.mrb[0].mxu0
    %v874 = vpop.f32.mrb[0].mxu0
    %875 = vdwg.mxu0
    %v876 = vrot.slane %v870, 4
    %v877 = vadd.f32 %v870, %v876
    %v878 = vrot.slane %v877, 2
    %v879 = vadd.f32 %v877, %v878
    %v880 = vrot.slane %v879, 1
    %v881 = vadd.f32 %v879, %v880
    %v882 = vrot.slane %v872, 4
    %v883 = vadd.f32 %v872, %v882
    %v884 = vrot.slane %v883, 2
    %v885 = vadd.f32 %v883, %v884
    %v886 = vrot.slane %v885, 1
    %v887 = vadd.f32 %v885, %v886
    %v888 = vmul.f32 %v881, %v541
    %v889 = vmul.f32 %v887, %v541
    %v890 = vsub.f32 %v870, %v888
    %v891 = vsub.f32 %v872, %v889
    %v892 = vmul.f32 %v890, %v890
    %v893 = vmul.f32 %v891, %v891
    %v894 = vrot.slane %v892, 4
    %v895 = vadd.f32 %v892, %v894
    %v896 = vrot.slane %v895, 2
    %v897 = vadd.f32 %v895, %v896
    %v898 = vrot.slane %v897, 1
    %v899 = vadd.f32 %v897, %v898
    %v900 = vrot.slane %v893, 4
    %v901 = vadd.f32 %v893, %v900
    %v902 = vrot.slane %v901, 2
    %v903 = vadd.f32 %v901, %v902
    %v904 = vrot.slane %v903, 1
    %v905 = vadd.f32 %v903, %v904
    %v906 = vmul.f32 %v899, %v541
    %v907 = vmul.f32 %v905, %v541
    %s908 = scalar_lea.vmem [#allocation7], 1
    %v909 = vld [vmem:[%s908] ss:$8 sm:$0x3]
    %v910 = vadd.f32 %v906, 1e-05
    %v911 = vadd.f32 %v907, 1e-05
    %v912 = vrsqrt.pop %v910
    %v913 = vrsqrt.pop %v911
    %v916 = vcombine.low %v912, %v913
    %v918 = vunpack.c.l.s4 1966171168
    %v919 = vunpack.c.0.s8 %v918
    %v920 = vlaneseq
    %v921 = vshrl.u32 %v920, 7
    %v922 = vsub.s32 %v919, %v921
    %v923 = vrot.slane %v916, %v922
    %v925 = vunpack.c.l.s4 1966171168
    %v926 = vunpack.c.0.s8 %v925
    %v927 = vlaneseq
    %v928 = vshrl.u32 %v927, 7
    %v929 = vsub.s32 %v926, %v928
    %v930 = vrot.slane %v923, %v929
    %v932 = vmul.f32 %v909, %v930
    %s933 = scalar_lea.vmem [#allocation7], 4
    %v934 = vld [vmem:[%s933] ss:$8 sm:$0x3]
    %v936 = vlaneseq
    %v937 = vshrl.u32 %v936, 7
    %v938 = vsub.s32 0, %v937
    %v939 = vrot.slane %v932, %v938
    %v940 = vlaneseq
    %v941 = vshrl.u32 %v940, 7
    %v942 = vsub.s32 1, %v941
    %v943 = vrot.slane %v932, %v942
    %v946 = vmul.f32 %v888, %v939
    %v947 = vmul.f32 %v889, %v943
    %v950 = vcombine.low %v946, %v947
    %v952 = vunpack.c.l.s4 1966171168
    %v953 = vunpack.c.0.s8 %v952
    %v954 = vlaneseq
    %v955 = vshrl.u32 %v954, 7
    %v956 = vsub.s32 %v953, %v955
    %v957 = vrot.slane %v950, %v956
    %v959 = vunpack.c.l.s4 1966171168
    %v960 = vunpack.c.0.s8 %v959
    %v961 = vlaneseq
    %v962 = vshrl.u32 %v961, 7
    %v963 = vsub.s32 %v960, %v962
    %v964 = vrot.slane %v957, %v963
    %v966 = vsub.f32 %v934, %v964
    %v967 = vmul.f32 %v870, %v939
    %v968 = vmul.f32 %v872, %v943
    %v970 = vlaneseq
    %v971 = vshrl.u32 %v970, 7
    %v972 = vsub.s32 0, %v971
    %v973 = vrot.slane %v966, %v972
    %v974 = vlaneseq
    %v975 = vshrl.u32 %v974, 7
    %v976 = vsub.s32 1, %v975
    %v977 = vrot.slane %v966, %v976
    %v980 = vadd.f32 %v967, %v973
    %v981 = vadd.f32 %v968, %v977
    %vm982 = vcmp.gt.f32.partialorder %v980, 0.0
    %vm983 = vcmp.gt.f32.partialorder %v981, 0.0
    %v984 = vmul.f32 %v980, 0.01
    %v985 = vmul.f32 %v981, 0.01
    %v986 = vsel %vm982, %v980, %v984
    %v987 = vsel %vm983, %v981, %v985
    %v988 = vpack.c.bf16 %v986, %v986
    %v989 = vpack.c.bf16 %v987, %v987
    %v990 = vld [vmem:[#allocation5 + $0x300] sm:$0xff]
    %v991 = vld [vmem:[#allocation5 + $0x308] sm:$0xff]
    %v992 = vld [vmem:[#allocation5 + $0x310] sm:$0xff]
    %v993 = vld [vmem:[#allocation5 + $0x318] sm:$0xff]
    %v994 = vld [vmem:[#allocation5 + $0x320] sm:$0xff]
    %v995 = vld [vmem:[#allocation5 + $0x328] sm:$0xff]
    %v996 = vld [vmem:[#allocation5 + $0x330] sm:$0xff]
    %v997 = vld [vmem:[#allocation5 + $0x338] sm:$0xff]
    %v998 = vld [vmem:[#allocation5 + $0x340] sm:$0xff]
    %v999 = vld [vmem:[#allocation5 + $0x348] sm:$0xff]
    %v1000 = vld [vmem:[#allocation5 + $0x350] sm:$0xff]
    %v1001 = vld [vmem:[#allocation5 + $0x358] sm:$0xff]
    %v1002 = vld [vmem:[#allocation5 + $0x360] sm:$0xff]
    %v1003 = vld [vmem:[#allocation5 + $0x368] sm:$0xff]
    %v1004 = vld [vmem:[#allocation5 + $0x370] sm:$0xff]
    %v1005 = vld [vmem:[#allocation5 + $0x378] sm:$0xff]
    %v1006 = vld [vmem:[#allocation5 + $0x380] sm:$0xff]
    %v1007 = vld [vmem:[#allocation5 + $0x388] sm:$0xff]
    %v1008 = vld [vmem:[#allocation5 + $0x390] sm:$0xff]
    %v1009 = vld [vmem:[#allocation5 + $0x398] sm:$0xff]
    %v1010 = vld [vmem:[#allocation5 + $0x3a0] sm:$0xff]
    %v1011 = vld [vmem:[#allocation5 + $0x3a8] sm:$0xff]
    %v1012 = vld [vmem:[#allocation5 + $0x3b0] sm:$0xff]
    %v1013 = vld [vmem:[#allocation5 + $0x3b8] sm:$0xff]
    %v1014 = vld [vmem:[#allocation5 + $0x3c0] sm:$0xff]
    %v1015 = vld [vmem:[#allocation5 + $0x3c8] sm:$0xff]
    %v1016 = vld [vmem:[#allocation5 + $0x3d0] sm:$0xff]
    %v1017 = vld [vmem:[#allocation5 + $0x3d8] sm:$0xff]
    %v1018 = vld [vmem:[#allocation5 + $0x3e0] sm:$0xff]
    %v1019 = vld [vmem:[#allocation5 + $0x3e8] sm:$0xff]
    %v1020 = vld [vmem:[#allocation5 + $0x3f0] sm:$0xff]
    %v1021 = vld [vmem:[#allocation5 + $0x3f8] sm:$0xff]
    %v1054 = vunpack.c.l.b16 %v990
    %v1055 = vunpack.c.h.b16 %v990
    %v1056 = vunpack.c.l.b16 %v991
    %v1057 = vunpack.c.h.b16 %v991
    %v1058 = vunpack.c.l.b16 %v992
    %v1059 = vunpack.c.h.b16 %v992
    %v1060 = vunpack.c.l.b16 %v993
    %v1061 = vunpack.c.h.b16 %v993
    %v1062 = vunpack.c.l.b16 %v994
    %v1063 = vunpack.c.h.b16 %v994
    %v1064 = vunpack.c.l.b16 %v995
    %v1065 = vunpack.c.h.b16 %v995
    %v1066 = vunpack.c.l.b16 %v996
    %v1067 = vunpack.c.h.b16 %v996
    %v1068 = vunpack.c.l.b16 %v997
    %v1069 = vunpack.c.h.b16 %v997
    %v1070 = vunpack.c.l.b16 %v998
    %v1071 = vunpack.c.h.b16 %v998
    %v1072 = vunpack.c.l.b16 %v999
    %v1073 = vunpack.c.h.b16 %v999
    %v1074 = vunpack.c.l.b16 %v1000
    %v1075 = vunpack.c.h.b16 %v1000
    %v1076 = vunpack.c.l.b16 %v1001
    %v1077 = vunpack.c.h.b16 %v1001
    %v1078 = vunpack.c.l.b16 %v1002
    %v1079 = vunpack.c.h.b16 %v1002
    %v1080 = vunpack.c.l.b16 %v1003
    %v1081 = vunpack.c.h.b16 %v1003
    %v1082 = vunpack.c.l.b16 %v1004
    %v1083 = vunpack.c.h.b16 %v1004
    %v1084 = vunpack.c.l.b16 %v1005
    %v1085 = vunpack.c.h.b16 %v1005
    %v1086 = vunpack.c.l.b16 %v1006
    %v1087 = vunpack.c.h.b16 %v1006
    %v1088 = vunpack.c.l.b16 %v1007
    %v1089 = vunpack.c.h.b16 %v1007
    %v1090 = vunpack.c.l.b16 %v1008
    %v1091 = vunpack.c.h.b16 %v1008
    %v1092 = vunpack.c.l.b16 %v1009
    %v1093 = vunpack.c.h.b16 %v1009
    %v1094 = vunpack.c.l.b16 %v1010
    %v1095 = vunpack.c.h.b16 %v1010
    %v1096 = vunpack.c.l.b16 %v1011
    %v1097 = vunpack.c.h.b16 %v1011
    %v1098 = vunpack.c.l.b16 %v1012
    %v1099 = vunpack.c.h.b16 %v1012
    %v1100 = vunpack.c.l.b16 %v1013
    %v1101 = vunpack.c.h.b16 %v1013
    %v1102 = vunpack.c.l.b16 %v1014
    %v1103 = vunpack.c.h.b16 %v1014
    %v1104 = vunpack.c.l.b16 %v1015
    %v1105 = vunpack.c.h.b16 %v1015
    %v1106 = vunpack.c.l.b16 %v1016
    %v1107 = vunpack.c.h.b16 %v1016
    %v1108 = vunpack.c.l.b16 %v1017
    %v1109 = vunpack.c.h.b16 %v1017
    %v1110 = vunpack.c.l.b16 %v1018
    %v1111 = vunpack.c.h.b16 %v1018
    %v1112 = vunpack.c.l.b16 %v1019
    %v1113 = vunpack.c.h.b16 %v1019
    %v1114 = vunpack.c.l.b16 %v1020
    %v1115 = vunpack.c.h.b16 %v1020
    %v1116 = vunpack.c.l.b16 %v1021
    %v1117 = vunpack.c.h.b16 %v1021
    %v1118 = vpack.c.b16 %v1056, %v1054
    %v1119 = vpack.c.b16 %v1057, %v1055
    %v1120 = vpack.c.b16 %v1060, %v1058
    %v1121 = vpack.c.b16 %v1061, %v1059
    %v1122 = vpack.c.b16 %v1064, %v1062
    %v1123 = vpack.c.b16 %v1065, %v1063
    %v1124 = vpack.c.b16 %v1068, %v1066
    %v1125 = vpack.c.b16 %v1069, %v1067
    %v1126 = vpack.c.b16 %v1072, %v1070
    %v1127 = vpack.c.b16 %v1073, %v1071
    %v1128 = vpack.c.b16 %v1076, %v1074
    %v1129 = vpack.c.b16 %v1077, %v1075
    %v1130 = vpack.c.b16 %v1080, %v1078
    %v1131 = vpack.c.b16 %v1081, %v1079
    %v1132 = vpack.c.b16 %v1084, %v1082
    %v1133 = vpack.c.b16 %v1085, %v1083
    %v1134 = vpack.c.b16 %v1088, %v1086
    %v1135 = vpack.c.b16 %v1089, %v1087
    %v1136 = vpack.c.b16 %v1092, %v1090
    %v1137 = vpack.c.b16 %v1093, %v1091
    %v1138 = vpack.c.b16 %v1096, %v1094
    %v1139 = vpack.c.b16 %v1097, %v1095
    %v1140 = vpack.c.b16 %v1100, %v1098
    %v1141 = vpack.c.b16 %v1101, %v1099
    %v1142 = vpack.c.b16 %v1104, %v1102
    %v1143 = vpack.c.b16 %v1105, %v1103
    %v1144 = vpack.c.b16 %v1108, %v1106
    %v1145 = vpack.c.b16 %v1109, %v1107
    %v1146 = vpack.c.b16 %v1112, %v1110
    %v1147 = vpack.c.b16 %v1113, %v1111
    %v1148 = vpack.c.b16 %v1116, %v1114
    %v1149 = vpack.c.b16 %v1117, %v1115
    %1182 = vmatprep.subr.bf16.mxu0 %v1119
    %1183 = vmatpush1.bf16.msra.mxu0 %v1118
    %1184 = vmatprep.subr.bf16.mxu0 %v1121
    %1185 = vmatpush1.bf16.msra.mxu0 %v1120
    %1186 = vmatprep.subr.bf16.mxu0 %v1123
    %1187 = vmatpush1.bf16.msra.mxu0 %v1122
    %1188 = vmatprep.subr.bf16.mxu0 %v1125
    %1189 = vmatpush1.bf16.msra.mxu0 %v1124
    %1190 = vmatprep.subr.bf16.mxu0 %v1127
    %1191 = vmatpush1.bf16.msra.mxu0 %v1126
    %1192 = vmatprep.subr.bf16.mxu0 %v1129
    %1193 = vmatpush1.bf16.msra.mxu0 %v1128
    %1194 = vmatprep.subr.bf16.mxu0 %v1131
    %1195 = vmatpush1.bf16.msra.mxu0 %v1130
    %1196 = vmatprep.subr.bf16.mxu0 %v1133
    %1197 = vmatpush1.bf16.msra.mxu0 %v1132
    %1198 = vmatprep.subr.bf16.mxu0 %v1135
    %1199 = vmatpush1.bf16.msra.mxu0 %v1134
    %1200 = vmatprep.subr.bf16.mxu0 %v1137
    %1201 = vmatpush1.bf16.msra.mxu0 %v1136
    %1202 = vmatprep.subr.bf16.mxu0 %v1139
    %1203 = vmatpush1.bf16.msra.mxu0 %v1138
    %1204 = vmatprep.subr.bf16.mxu0 %v1141
    %1205 = vmatpush1.bf16.msra.mxu0 %v1140
    %1206 = vmatprep.subr.bf16.mxu0 %v1143
    %1207 = vmatpush1.bf16.msra.mxu0 %v1142
    %1208 = vmatprep.subr.bf16.mxu0 %v1145
    %1209 = vmatpush1.bf16.msra.mxu0 %v1144
    %1210 = vmatprep.subr.bf16.mxu0 %v1147
    %1211 = vmatpush1.bf16.msra.mxu0 %v1146
    %1212 = vmatprep.subr.bf16.mxu0 %v1149
    %1213 = vmatpush1.bf16.msra.mxu0 %v1148
    %1214 = vmatprep.mubr.bf16.mxu0 %v989
    %1215 = vmatmul.mubr.bf16.gmra.mrb[0].mxu0 %v988
    %v1216 = vpop.f32.mrb[0].mxu0
    %v1217 = vadd.f32 0.0, %v1216
    %v1218 = vpop.f32.mrb[0].mxu0
    %v1219 = vadd.f32 0.0, %v1218
    %v1220 = vpop.f32.mrb[0].mxu0
    %v1221 = vpop.f32.mrb[0].mxu0
    %1222 = vdwg.mxu0
    %v1223 = vrot.slane %v1217, 4
    %v1224 = vadd.f32 %v1217, %v1223
    %v1225 = vrot.slane %v1224, 2
    %v1226 = vadd.f32 %v1224, %v1225
    %v1227 = vrot.slane %v1226, 1
    %v1228 = vadd.f32 %v1226, %v1227
    %v1229 = vrot.slane %v1219, 4
    %v1230 = vadd.f32 %v1219, %v1229
    %v1231 = vrot.slane %v1230, 2
    %v1232 = vadd.f32 %v1230, %v1231
    %v1233 = vrot.slane %v1232, 1
    %v1234 = vadd.f32 %v1232, %v1233
    %v1235 = vmul.f32 %v1228, %v541
    %v1236 = vmul.f32 %v1234, %v541
    %v1237 = vsub.f32 %v1217, %v1235
    %v1238 = vsub.f32 %v1219, %v1236
    %v1239 = vmul.f32 %v1237, %v1237
    %v1240 = vmul.f32 %v1238, %v1238
    %v1241 = vrot.slane %v1239, 4
    %v1242 = vadd.f32 %v1239, %v1241
    %v1243 = vrot.slane %v1242, 2
    %v1244 = vadd.f32 %v1242, %v1243
    %v1245 = vrot.slane %v1244, 1
    %v1246 = vadd.f32 %v1244, %v1245
    %v1247 = vrot.slane %v1240, 4
    %v1248 = vadd.f32 %v1240, %v1247
    %v1249 = vrot.slane %v1248, 2
    %v1250 = vadd.f32 %v1248, %v1249
    %v1251 = vrot.slane %v1250, 1
    %v1252 = vadd.f32 %v1250, %v1251
    %v1253 = vmul.f32 %v1246, %v541
    %v1254 = vmul.f32 %v1252, %v541
    %s1255 = scalar_lea.vmem [#allocation7], 2
    %v1256 = vld [vmem:[%s1255] ss:$8 sm:$0x3]
    %v1257 = vadd.f32 %v1253, 1e-05
    %v1258 = vadd.f32 %v1254, 1e-05
    %v1259 = vrsqrt.pop %v1257
    %v1260 = vrsqrt.pop %v1258
    %v1263 = vcombine.low %v1259, %v1260
    %v1265 = vunpack.c.l.s4 1966171168
    %v1266 = vunpack.c.0.s8 %v1265
    %v1267 = vlaneseq
    %v1268 = vshrl.u32 %v1267, 7
    %v1269 = vsub.s32 %v1266, %v1268
    %v1270 = vrot.slane %v1263, %v1269
    %v1272 = vunpack.c.l.s4 1966171168
    %v1273 = vunpack.c.0.s8 %v1272
    %v1274 = vlaneseq
    %v1275 = vshrl.u32 %v1274, 7
    %v1276 = vsub.s32 %v1273, %v1275
    %v1277 = vrot.slane %v1270, %v1276
    %v1279 = vmul.f32 %v1256, %v1277
    %s1280 = scalar_lea.vmem [#allocation7], 5
    %v1281 = vld [vmem:[%s1280] ss:$8 sm:$0x3]
    %v1283 = vlaneseq
    %v1284 = vshrl.u32 %v1283, 7
    %v1285 = vsub.s32 0, %v1284
    %v1286 = vrot.slane %v1279, %v1285
    %v1287 = vlaneseq
    %v1288 = vshrl.u32 %v1287, 7
    %v1289 = vsub.s32 1, %v1288
    %v1290 = vrot.slane %v1279, %v1289
    %v1293 = vmul.f32 %v1235, %v1286
    %v1294 = vmul.f32 %v1236, %v1290
    %v1297 = vcombine.low %v1293, %v1294
    %v1299 = vunpack.c.l.s4 1966171168
    %v1300 = vunpack.c.0.s8 %v1299
    %v1301 = vlaneseq
    %v1302 = vshrl.u32 %v1301, 7
    %v1303 = vsub.s32 %v1300, %v1302
    %v1304 = vrot.slane %v1297, %v1303
    %v1306 = vunpack.c.l.s4 1966171168
    %v1307 = vunpack.c.0.s8 %v1306
    %v1308 = vlaneseq
    %v1309 = vshrl.u32 %v1308, 7
    %v1310 = vsub.s32 %v1307, %v1309
    %v1311 = vrot.slane %v1304, %v1310
    %v1313 = vsub.f32 %v1281, %v1311
    %v1314 = vmul.f32 %v1217, %v1286
    %v1315 = vmul.f32 %v1219, %v1290
    %v1317 = vlaneseq
    %v1318 = vshrl.u32 %v1317, 7
    %v1319 = vsub.s32 0, %v1318
    %v1320 = vrot.slane %v1313, %v1319
    %v1321 = vlaneseq
    %v1322 = vshrl.u32 %v1321, 7
    %v1323 = vsub.s32 1, %v1322
    %v1324 = vrot.slane %v1313, %v1323
    %v1327 = vadd.f32 %v1314, %v1320
    %v1328 = vadd.f32 %v1315, %v1324
    %vm1329 = vcmp.gt.f32.partialorder %v1327, 0.0
    %vm1330 = vcmp.gt.f32.partialorder %v1328, 0.0
    %v1331 = vmul.f32 %v1327, 0.01
    %v1332 = vmul.f32 %v1328, 0.01
    %v1333 = vsel %vm1329, %v1327, %v1331
    %v1334 = vsel %vm1330, %v1328, %v1332
    %v1335 = vpack.c.bf16 %v1333, %v1333
    %v1336 = vpack.c.bf16 %v1334, %v1334
    %v1337 = vld [vmem:[#allocation5 + $0x400] sm:$0xff]
    %v1338 = vld [vmem:[#allocation5 + $0x408] sm:$0xff]
    %v1339 = vld [vmem:[#allocation5 + $0x410] sm:$0xff]
    %v1340 = vld [vmem:[#allocation5 + $0x418] sm:$0xff]
    %v1341 = vld [vmem:[#allocation5 + $0x420] sm:$0xff]
    %v1342 = vld [vmem:[#allocation5 + $0x428] sm:$0xff]
    %v1343 = vld [vmem:[#allocation5 + $0x430] sm:$0xff]
    %v1344 = vld [vmem:[#allocation5 + $0x438] sm:$0xff]
    %v1345 = vld [vmem:[#allocation5 + $0x440] sm:$0xff]
    %v1346 = vld [vmem:[#allocation5 + $0x448] sm:$0xff]
    %v1347 = vld [vmem:[#allocation5 + $0x450] sm:$0xff]
    %v1348 = vld [vmem:[#allocation5 + $0x458] sm:$0xff]
    %v1349 = vld [vmem:[#allocation5 + $0x460] sm:$0xff]
    %v1350 = vld [vmem:[#allocation5 + $0x468] sm:$0xff]
    %v1351 = vld [vmem:[#allocation5 + $0x470] sm:$0xff]
    %v1352 = vld [vmem:[#allocation5 + $0x478] sm:$0xff]
    %v1353 = vld [vmem:[#allocation5 + $0x480] sm:$0xff]
    %v1354 = vld [vmem:[#allocation5 + $0x488] sm:$0xff]
    %v1355 = vld [vmem:[#allocation5 + $0x490] sm:$0xff]
    %v1356 = vld [vmem:[#allocation5 + $0x498] sm:$0xff]
    %v1357 = vld [vmem:[#allocation5 + $0x4a0] sm:$0xff]
    %v1358 = vld [vmem:[#allocation5 + $0x4a8] sm:$0xff]
    %v1359 = vld [vmem:[#allocation5 + $0x4b0] sm:$0xff]
    %v1360 = vld [vmem:[#allocation5 + $0x4b8] sm:$0xff]
    %v1361 = vld [vmem:[#allocation5 + $0x4c0] sm:$0xff]
    %v1362 = vld [vmem:[#allocation5 + $0x4c8] sm:$0xff]
    %v1363 = vld [vmem:[#allocation5 + $0x4d0] sm:$0xff]
    %v1364 = vld [vmem:[#allocation5 + $0x4d8] sm:$0xff]
    %v1365 = vld [vmem:[#allocation5 + $0x4e0] sm:$0xff]
    %v1366 = vld [vmem:[#allocation5 + $0x4e8] sm:$0xff]
    %v1367 = vld [vmem:[#allocation5 + $0x4f0] sm:$0xff]
    %v1368 = vld [vmem:[#allocation5 + $0x4f8] sm:$0xff]
    %s1369 = scalar_lea.vmem [#allocation7], 6
    %v1370 = vld [vmem:[%s1369] ss:$8 sm:$0x3]
    %v1372 = vlaneseq
    %v1373 = vshrl.u32 %v1372, 7
    %v1374 = vsub.s32 0, %v1373
    %v1375 = vrot.slane %v1370, %v1374
    %v1376 = vlaneseq
    %v1377 = vshrl.u32 %v1376, 7
    %v1378 = vsub.s32 1, %v1377
    %v1379 = vrot.slane %v1370, %v1378
    %v1414 = vunpack.c.l.b16 %v1337
    %v1415 = vunpack.c.h.b16 %v1337
    %v1416 = vunpack.c.l.b16 %v1338
    %v1417 = vunpack.c.h.b16 %v1338
    %v1418 = vunpack.c.l.b16 %v1339
    %v1419 = vunpack.c.h.b16 %v1339
    %v1420 = vunpack.c.l.b16 %v1340
    %v1421 = vunpack.c.h.b16 %v1340
    %v1422 = vunpack.c.l.b16 %v1341
    %v1423 = vunpack.c.h.b16 %v1341
    %v1424 = vunpack.c.l.b16 %v1342
    %v1425 = vunpack.c.h.b16 %v1342
    %v1426 = vunpack.c.l.b16 %v1343
    %v1427 = vunpack.c.h.b16 %v1343
    %v1428 = vunpack.c.l.b16 %v1344
    %v1429 = vunpack.c.h.b16 %v1344
    %v1430 = vunpack.c.l.b16 %v1345
    %v1431 = vunpack.c.h.b16 %v1345
    %v1432 = vunpack.c.l.b16 %v1346
    %v1433 = vunpack.c.h.b16 %v1346
    %v1434 = vunpack.c.l.b16 %v1347
    %v1435 = vunpack.c.h.b16 %v1347
    %v1436 = vunpack.c.l.b16 %v1348
    %v1437 = vunpack.c.h.b16 %v1348
    %v1438 = vunpack.c.l.b16 %v1349
    %v1439 = vunpack.c.h.b16 %v1349
    %v1440 = vunpack.c.l.b16 %v1350
    %v1441 = vunpack.c.h.b16 %v1350
    %v1442 = vunpack.c.l.b16 %v1351
    %v1443 = vunpack.c.h.b16 %v1351
    %v1444 = vunpack.c.l.b16 %v1352
    %v1445 = vunpack.c.h.b16 %v1352
    %v1446 = vunpack.c.l.b16 %v1353
    %v1447 = vunpack.c.h.b16 %v1353
    %v1448 = vunpack.c.l.b16 %v1354
    %v1449 = vunpack.c.h.b16 %v1354
    %v1450 = vunpack.c.l.b16 %v1355
    %v1451 = vunpack.c.h.b16 %v1355
    %v1452 = vunpack.c.l.b16 %v1356
    %v1453 = vunpack.c.h.b16 %v1356
    %v1454 = vunpack.c.l.b16 %v1357
    %v1455 = vunpack.c.h.b16 %v1357
    %v1456 = vunpack.c.l.b16 %v1358
    %v1457 = vunpack.c.h.b16 %v1358
    %v1458 = vunpack.c.l.b16 %v1359
    %v1459 = vunpack.c.h.b16 %v1359
    %v1460 = vunpack.c.l.b16 %v1360
    %v1461 = vunpack.c.h.b16 %v1360
    %v1462 = vunpack.c.l.b16 %v1361
    %v1463 = vunpack.c.h.b16 %v1361
    %v1464 = vunpack.c.l.b16 %v1362
    %v1465 = vunpack.c.h.b16 %v1362
    %v1466 = vunpack.c.l.b16 %v1363
    %v1467 = vunpack.c.h.b16 %v1363
    %v1468 = vunpack.c.l.b16 %v1364
    %v1469 = vunpack.c.h.b16 %v1364
    %v1470 = vunpack.c.l.b16 %v1365
    %v1471 = vunpack.c.h.b16 %v1365
    %v1472 = vunpack.c.l.b16 %v1366
    %v1473 = vunpack.c.h.b16 %v1366
    %v1474 = vunpack.c.l.b16 %v1367
    %v1475 = vunpack.c.h.b16 %v1367
    %v1476 = vunpack.c.l.b16 %v1368
    %v1477 = vunpack.c.h.b16 %v1368
    %v1478 = vpack.c.b16 %v1416, %v1414
    %v1479 = vpack.c.b16 %v1417, %v1415
    %v1480 = vpack.c.b16 %v1420, %v1418
    %v1481 = vpack.c.b16 %v1421, %v1419
    %v1482 = vpack.c.b16 %v1424, %v1422
    %v1483 = vpack.c.b16 %v1425, %v1423
    %v1484 = vpack.c.b16 %v1428, %v1426
    %v1485 = vpack.c.b16 %v1429, %v1427
    %v1486 = vpack.c.b16 %v1432, %v1430
    %v1487 = vpack.c.b16 %v1433, %v1431
    %v1488 = vpack.c.b16 %v1436, %v1434
    %v1489 = vpack.c.b16 %v1437, %v1435
    %v1490 = vpack.c.b16 %v1440, %v1438
    %v1491 = vpack.c.b16 %v1441, %v1439
    %v1492 = vpack.c.b16 %v1444, %v1442
    %v1493 = vpack.c.b16 %v1445, %v1443
    %v1494 = vpack.c.b16 %v1448, %v1446
    %v1495 = vpack.c.b16 %v1449, %v1447
    %v1496 = vpack.c.b16 %v1452, %v1450
    %v1497 = vpack.c.b16 %v1453, %v1451
    %v1498 = vpack.c.b16 %v1456, %v1454
    %v1499 = vpack.c.b16 %v1457, %v1455
    %v1500 = vpack.c.b16 %v1460, %v1458
    %v1501 = vpack.c.b16 %v1461, %v1459
    %v1502 = vpack.c.b16 %v1464, %v1462
    %v1503 = vpack.c.b16 %v1465, %v1463
    %v1504 = vpack.c.b16 %v1468, %v1466
    %v1505 = vpack.c.b16 %v1469, %v1467
    %v1506 = vpack.c.b16 %v1472, %v1470
    %v1507 = vpack.c.b16 %v1473, %v1471
    %v1508 = vpack.c.b16 %v1476, %v1474
    %v1509 = vpack.c.b16 %v1477, %v1475
    %1542 = vmatprep.subr.bf16.mxu0 %v1479
    %1543 = vmatpush1.bf16.msra.mxu0 %v1478
    %1544 = vmatprep.subr.bf16.mxu0 %v1481
    %1545 = vmatpush1.bf16.msra.mxu0 %v1480
    %1546 = vmatprep.subr.bf16.mxu0 %v1483
    %1547 = vmatpush1.bf16.msra.mxu0 %v1482
    %1548 = vmatprep.subr.bf16.mxu0 %v1485
    %1549 = vmatpush1.bf16.msra.mxu0 %v1484
    %1550 = vmatprep.subr.bf16.mxu0 %v1487
    %1551 = vmatpush1.bf16.msra.mxu0 %v1486
    %1552 = vmatprep.subr.bf16.mxu0 %v1489
    %1553 = vmatpush1.bf16.msra.mxu0 %v1488
    %1554 = vmatprep.subr.bf16.mxu0 %v1491
    %1555 = vmatpush1.bf16.msra.mxu0 %v1490
    %1556 = vmatprep.subr.bf16.mxu0 %v1493
    %1557 = vmatpush1.bf16.msra.mxu0 %v1492
    %1558 = vmatprep.subr.bf16.mxu0 %v1495
    %1559 = vmatpush1.bf16.msra.mxu0 %v1494
    %1560 = vmatprep.subr.bf16.mxu0 %v1497
    %1561 = vmatpush1.bf16.msra.mxu0 %v1496
    %1562 = vmatprep.subr.bf16.mxu0 %v1499
    %1563 = vmatpush1.bf16.msra.mxu0 %v1498
    %1564 = vmatprep.subr.bf16.mxu0 %v1501
    %1565 = vmatpush1.bf16.msra.mxu0 %v1500
    %1566 = vmatprep.subr.bf16.mxu0 %v1503
    %1567 = vmatpush1.bf16.msra.mxu0 %v1502
    %1568 = vmatprep.subr.bf16.mxu0 %v1505
    %1569 = vmatpush1.bf16.msra.mxu0 %v1504
    %1570 = vmatprep.subr.bf16.mxu0 %v1507
    %1571 = vmatpush1.bf16.msra.mxu0 %v1506
    %1572 = vmatprep.subr.bf16.mxu0 %v1509
    %1573 = vmatpush1.bf16.msra.mxu0 %v1508
    %1574 = vmatprep.mubr.bf16.mxu0 %v1336
    %1575 = vmatmul.mubr.bf16.gmra.mrb[0].mxu0 %v1335
    %v1576 = vpop.f32.mrb[0].mxu0
    %v1577 = vadd.f32 %v1375, %v1576
    %v1578 = vpop.f32.mrb[0].mxu0
    %v1579 = vadd.f32 %v1379, %v1578
    %v1580 = vpop.f32.mrb[0].mxu0
    %v1581 = vpop.f32.mrb[0].mxu0
    %1582 = vdwg.mxu0
    %v1583 = vld [vmem:[%s3] sm:$0xff]
    %v1584 = vmul.f32 %v1579, 0.5
    %v1585 = vmul.f32 %v1584, 1.442695
    %v1586 = vpow.pop %v1585
    %v1587 = vmul.f32 %v1583, %v1586
    %v1588 = vadd.f32 %v1587, %v1577
    %1589 = vst [vmem:[#allocation8] sm:$0xff] %v1588
    %1590 = vst [vmem:[#allocation8 + $0x8] sm:$0xff] %v1577
    %1591 = vst [vmem:[#allocation8 + $0x10] sm:$0xff] %v1579
    // Predicated region
    $region30: #{tpu_custom_call.1} parent=1 // pred_check
      _
    $region31: #{tpu_custom_call.1} parent=1 // pred_check_branch
      %1593 = sbr.rel (0) target = $region33
    $region32: #{tpu_custom_call.1} parent=1 // pred_region
      %s1595 = ssub.s32 384, 384
      %1596 = vsyncadd [#allocation4], %s1595
      %s1598 = sshll.u32 [#allocation8], 4
      %s1599 = int_to_ptr.vmem [resolvable:$true] %s1598
      %1601 = dma.vmem_to_hbm [thread:$0]  %s1599, 384, %s4, [#allocation4]
    $region33: #{tpu_custom_call.1} parent=1 // pred_fallthru
      _
    // Predicated region
    $region34: #{tpu_custom_call.1} parent=1 // pred_check
      _
    $region35: #{tpu_custom_call.1} parent=1 // pred_check_branch
      %1603 = sbr.rel (0) target = $region37
    $region36: #{tpu_custom_call.1} parent=1 // pred_region
      %1604 = dma.done [#allocation4], 384
    $region37: #{tpu_custom_call.1} parent=1 // pred_fallthru
      _
    %1605 = vsyncpa [#allocation3], 1
    %1606 = vsyncpa [#allocation6], 1
    %1607 = vsyncpa [#allocation4], 1

</llo_original>
